<compile_context>
chip_gen: v6e
topology: v6e:2x2x1
jax: 0.10.0
libtpu: 0.0.40
codegen_flags: <defaults>
</compile_context>

<pallas_src>
import numpy as np
import jax
import jax.numpy as jnp
from jax import lax
from jax.experimental import pallas as pl
from jax.experimental.pallas import tpu as pltpu

NUM_ACTIONS = 7      # env.action_space.n (MiniGrid-style discrete action space)
GRID = 7             # spatial size implied by fc1: conv1(s=2)->3x3, conv2->2x2, 64*2*2=256
EMB_DIM = 4
VOCAB = 32
PAD_A = 128          # lane-dense padded action dimension for the softmax output
O1, O2 = 3, 2        # conv1 / conv2 spatial output sizes
KA = 4 * 4 * 3 * VOCAB   # 1536 = (conv2 tap, conv1 tap, emb channel, vocab)


# ---------------------------------------------------------------------------
# The single fused Pallas kernel (4 matmuls total)
# ---------------------------------------------------------------------------
def actor_fused_kernel(sA_ref, w_ref, b_ref, o_ref, flat_ref):
    f32, bf16 = jnp.float32, jnp.bfloat16
    m2 = sA_ref.shape[0]          # 4 * B  (rows = (conv2 position)-major, batch-minor)
    bsz = m2 // 4

    # ---- embedding lookup + conv1, already im2col'd for conv2 : ONE matmul ----
    # 48 bands of 32 vocab lanes; weight = emb tables folded into conv1 taps,
    # block-diagonal over the conv2 tap, so N = 4*32 = 128 (conv2-im2col layout).
    vband = lax.broadcasted_iota(jnp.int32, sA_ref.shape, 1) & (VOCAB - 1)
    onehot = (sA_ref[...] == vband).astype(bf16)                        # [m2, 1536]
    h1 = jnp.dot(onehot, w_ref[0:KA, :], preferred_element_type=f32)
    h1 = jnp.maximum(h1 + b_ref[0:1, :], 0.0)                           # [m2, 128]

    # ---- conv2 : taps stacked along K -> single [m2, 128] @ [128, 64] ----
    h2 = jnp.dot(h1.astype(bf16), w_ref[KA:KA + 128, 0:64],
                 preferred_element_type=f32)
    h2 = jnp.maximum(h2 + b_ref[1:2, 0:64], 0.0)                        # [m2, 64]
    h2b = h2.astype(bf16)

    # ---- flatten: move the 4 conv2 positions from sublanes to lanes ----
    for pos in range(4):
        flat_ref[:, pos * 64:(pos + 1) * 64] = h2b[pos * bsz:(pos + 1) * bsz, :]

    # ---- fc1 : single K=256 matmul (weight rows pre-permuted to this layout) ----
    h3 = jnp.dot(flat_ref[...], w_ref[KA + 128:KA + 384, :],
                 preferred_element_type=f32)
    h3 = jnp.maximum(h3 + b_ref[2:3, :], 0.0)                           # [B, 128]

    # ---- fc2 (lane-padded to 128; pad bias -1e30 -> prob exactly 0) + softmax ----
    logits = jnp.dot(h3.astype(bf16), w_ref[KA + 384:KA + 512, :],
                     preferred_element_type=f32) + b_ref[3:4, :]
    mx = jnp.max(logits, axis=-1, keepdims=True)
    e = jnp.exp(logits - mx)
    o_ref[...] = e * pl.reciprocal(jnp.sum(e, axis=-1, keepdims=True), approx=True)


# ---------------------------------------------------------------------------
# Constant index map: which raw state int feeds each stage-A one-hot band
# ---------------------------------------------------------------------------
def _im2col_indices():
    """idx[pos, k2*12 + k1*3 + c] = flat index into states[b].reshape(-1)."""
    idx = np.zeros((4, 48), np.int32)
    for oy2 in range(O2):
        for ox2 in range(O2):
            pos = oy2 * O2 + ox2
            for dy2 in range(2):
                for dx2 in range(2):
                    k2 = dy2 * 2 + dx2
                    for dy1 in range(2):
                        for dx1 in range(2):
                            k1 = dy1 * 2 + dx1
                            iy = 2 * (oy2 + dy2) + dy1
                            ix = 2 * (ox2 + dx2) + dx1
                            for c in range(3):
                                idx[pos, k2 * 12 + k1 * 3 + c] = (iy * GRID + ix) * 3 + c
    return idx


_IM2COL_IDX = _im2col_indices()


# ---------------------------------------------------------------------------
# One-time parameter preparation (hoisted out of the hot path)
# ---------------------------------------------------------------------------
def init_params(key):
    """Deterministic synthetic parameters in PyTorch layouts."""
    ks = jax.random.split(key, 12)
    return {
        "obj_emb":   jax.random.normal(ks[0], (VOCAB, EMB_DIM), jnp.float32) * 0.5,
        "color_emb": jax.random.normal(ks[1], (VOCAB, EMB_DIM), jnp.float32) * 0.5,
        "state_emb": jax.random.normal(ks[2], (VOCAB, EMB_DIM), jnp.float32) * 0.5,
        "conv1_w": jax.random.normal(ks[3], (32, 12, 2, 2), jnp.float32) * 0.15,
        "conv1_b": jax.random.normal(ks[4], (32,), jnp.float32) * 0.05,
        "conv2_w": jax.random.normal(ks[5], (64, 32, 2, 2), jnp.float32) * 0.1,
        "conv2_b": jax.random.normal(ks[6], (64,), jnp.float32) * 0.05,
        "fc1_w": jax.random.normal(ks[7], (128, 256), jnp.float32) * 0.06,
        "fc1_b": jax.random.normal(ks[8], (128,), jnp.float32) * 0.05,
        "fc2_w": jax.random.normal(ks[9], (NUM_ACTIONS, 128), jnp.float32) * 0.08,
        "fc2_b": jax.random.normal(ks[10], (NUM_ACTIONS,), jnp.float32) * 0.05,
    }


def prepare_params(p):
    """Convert PyTorch-layout params into the fused-kernel layout, once.
    Nothing here depends on the batch size (all kernel weights are per-sample)."""
    f32, bf16 = jnp.float32, jnp.bfloat16

    # Fold the three embedding tables into the conv1 taps (both are linear):
    #   M1[(k1, c, v), o] = sum_d emb_c[v, d] * conv1_w[o, c*4+d, dy1, dx1]
    emb = jnp.stack([p["obj_emb"], p["color_emb"], p["state_emb"]])      # [3, 32, 4]
    w1 = p["conv1_w"].reshape(32, 3, 4, 2, 2)                            # [o, c, d, dy, dx]
    M1 = jnp.einsum("cvd,ocdyx->yxcvo", emb, w1).reshape(4 * 3 * VOCAB, 32)

    # Stage-A weight: block-diagonal over the conv2 tap k2, so conv1 outputs come
    # out already in conv2-im2col layout (lane = k2*32 + conv1 channel).
    EA = jnp.zeros((KA, 128), f32)
    for k2 in range(4):
        EA = EA.at[k2 * 384:(k2 + 1) * 384, k2 * 32:(k2 + 1) * 32].set(M1)

    # conv2 taps stacked along K: row = k2*32 + cin; lane-pad outputs 64 -> 128.
    W2 = jnp.transpose(p["conv2_w"], (2, 3, 1, 0)).reshape(128, 64)
    W2 = jnp.pad(W2, ((0, 0), (0, 64)))

    # fc1 rows permuted to consume the (pos-major, channel-minor) flatten directly.
    Wf1 = jnp.transpose(p["fc1_w"].reshape(128, 64, 4), (2, 1, 0)).reshape(256, 128)

    # fc2 lane-padded 7 -> 128 (pad weights 0, pad bias -1e30 => softmax prob 0).
    Wf2 = jnp.zeros((128, PAD_A), f32).at[:, :NUM_ACTIONS].set(p["fc2_w"].T)

    w_all = jnp.concatenate([EA, W2, Wf1, Wf2], axis=0).astype(bf16)     # [2048, 128]

    b1t = jnp.tile(p["conv1_b"], 4)                                      # [128]
    b2p = jnp.pad(p["conv2_b"], (0, 64))                                 # [128]
    bf2 = jnp.full((PAD_A,), -1e30, f32).at[:NUM_ACTIONS].set(p["fc2_b"])
    bias_all = jnp.stack([b1t, b2p, p["fc1_b"], bf2]).astype(f32)        # [4, 128]
    return {"w_all": w_all, "bias_all": bias_all}


# ---------------------------------------------------------------------------
# Forward pass (single fused Pallas call)
# ---------------------------------------------------------------------------
def forward_pallas(states, prep):
    B = states.shape[0]
    # Glue (pure integer indexing): gather the raw int states into stage-A im2col
    # order and repeat each of the 48 bands across its 32 vocab lanes.
    g = states.reshape(B, GRID * GRID * 3)[:, _IM2COL_IDX]               # [B, 4, 48]
    sA = jnp.transpose(g, (1, 0, 2)).reshape(4 * B, 48)                  # rows pos*B + b
    sA = jnp.repeat(sA, VOCAB, axis=1).astype(jnp.int32)                 # [4B, 1536]

    # For large rollout batches: add grid=(B // TB,) with an index_map on sA / out
    # (weights/biases use a constant block so they stay resident) and
    # compiler_params=pltpu.CompilerParams(dimension_semantics=("parallel",)).
    padded = pl.pallas_call(
        actor_fused_kernel,
        out_shape=jax.ShapeDtypeStruct((B, PAD_A), jnp.float32),
        in_specs=[pl.BlockSpec(memory_space=pltpu.MemorySpace.VMEM)] * 3,
        out_specs=pl.BlockSpec(memory_space=pltpu.MemorySpace.VMEM),
        scratch_shapes=[pltpu.VMEM((B, 256), jnp.bfloat16)],
    )(sA, prep["w_all"], prep["bias_all"])
    return padded[:, :NUM_ACTIONS]


# ---------------------------------------------------------------------------
# Pure-JAX f32 reference (mirrors the PyTorch forward, NCHW) for validation
# ---------------------------------------------------------------------------
def forward_ref(states, p):
    B = states.shape[0]
    obj = p["obj_emb"][states[..., 0]]
    col = p["color_emb"][states[..., 1]]
    sta = p["state_emb"][states[..., 2]]
    x = jnp.concatenate([obj, col, sta], axis=-1)
    x = jnp.transpose(x, (0, 3, 1, 2))                      # .permute(0,3,1,2)
    dn = ("NCHW", "OIHW", "NCHW")
    y1 = lax.conv_general_dilated(x, p["conv1_w"], (2, 2), "VALID", dimension_numbers=dn)
    y1 = jnp.maximum(y1 + p["conv1_b"][None, :, None, None], 0.0)
    y2 = lax.conv_general_dilated(y1, p["conv2_w"], (1, 1), "VALID", dimension_numbers=dn)
    y2 = jnp.maximum(y2 + p["conv2_b"][None, :, None, None], 0.0)
    flat = y2.reshape(B, -1)
    h = jnp.maximum(flat @ p["fc1_w"].T + p["fc1_b"], 0.0)
    logits = h @ p["fc2_w"].T + p["fc2_b"]
    return jax.nn.softmax(logits, axis=-1)


if __name__ == "__main__":
    key = jax.random.PRNGKey(0)
    pkey, skey = jax.random.split(key)
    params = init_params(pkey)

    B = 2
    states = jax.random.randint(skey, (B, GRID, GRID, 3), 0, VOCAB, dtype=jnp.int32)

    prep = prepare_params(params)             # one-time, batch-independent
    fwd = jax.jit(forward_pallas)
    probs = jax.block_until_ready(fwd(states, prep))

    ref = jax.block_until_ready(forward_ref(states, params))
    # bf16 matmul operands + approx reciprocal -> loose-ish tolerances.
    np.testing.assert_allclose(np.asarray(probs), np.asarray(ref), rtol=2e-2, atol=2e-2)
    np.testing.assert_allclose(np.asarray(probs).sum(axis=-1), np.ones(B), atol=1e-2)

    print("KERNEL_OK")
</pallas_src>

<mosaic_0001>
module attributes {stable_mosaic.version = 11 : i64} {
  func.func @actor_fused_kernel(%arg0: memref<8x1536xi32, #tpu.memory_space<vmem>>, %arg1: memref<2048x128xbf16, #tpu.memory_space<vmem>>, %arg2: memref<4x128xf32, #tpu.memory_space<vmem>>, %arg3: memref<2x128xf32, #tpu.memory_space<vmem>>, %arg4: memref<2x256xbf16, #tpu.memory_space<vmem>>) attributes {dimension_semantics = [], scalar_prefetch = 0 : i64, scratch_operands = 1 : i64, tpu.core_type = #tpu.core_type<tc>} {
    %0 = tpu.iota {dimensions = array<i32: 1>} : vector<8x1536xi32>
    %c31_i32 = arith.constant 31 : i32
    %1 = vector.broadcast %c31_i32 : i32 to vector<8x1536xi32>
    %2 = arith.andi %0, %1 : vector<8x1536xi32>
    %c0 = arith.constant 0 : index
    %c0_0 = arith.constant 0 : index
    %3 = vector.load %arg0[%c0, %c0_0] : memref<8x1536xi32, #tpu.memory_space<vmem>>, vector<8x1536xi32>
    %4 = arith.cmpi eq, %3, %2 : vector<8x1536xi32>
    %5 = arith.extui %4 : vector<8x1536xi1> to vector<8x1536xi32>
    %6 = arith.sitofp %5 : vector<8x1536xi32> to vector<8x1536xf32>
    %7 = arith.truncf %6 : vector<8x1536xf32> to vector<8x1536xbf16>
    %c0_1 = arith.constant 0 : index
    %c0_2 = arith.constant 0 : index
    %8 = vector.load %arg1[%c0_1, %c0_2] : memref<2048x128xbf16, #tpu.memory_space<vmem>>, vector<1536x128xbf16>
    %cst = arith.constant dense<0.000000e+00> : vector<8x128xf32>
    %9 = tpu.matmul %7, %8, %cst {dimension_numbers = #tpu.dot_dimension_numbers<[1], [0], [0], [1], [0, 0, 1, 1], [], []>} : vector<8x1536xbf16>, vector<1536x128xbf16>, vector<8x128xf32> -> vector<8x128xf32>
    %c0_3 = arith.constant 0 : index
    %c0_4 = arith.constant 0 : index
    %10 = vector.load %arg2[%c0_3, %c0_4] : memref<4x128xf32, #tpu.memory_space<vmem>>, vector<1x128xf32>
    %11 = vector.broadcast %10 : vector<1x128xf32> to vector<8x128xf32>
    %12 = arith.addf %9, %11 : vector<8x128xf32>
    %cst_5 = arith.constant 0.000000e+00 : f32
    %13 = vector.broadcast %cst_5 : f32 to vector<8x128xf32>
    %14 = arith.maximumf %12, %13 : vector<8x128xf32>
    %15 = arith.truncf %14 : vector<8x128xf32> to vector<8x128xbf16>
    %c1536 = arith.constant 1536 : index
    %c0_6 = arith.constant 0 : index
    %16 = vector.load %arg1[%c1536, %c0_6] : memref<2048x128xbf16, #tpu.memory_space<vmem>>, vector<128x64xbf16>
    %cst_7 = arith.constant dense<0.000000e+00> : vector<8x64xf32>
    %17 = tpu.matmul %15, %16, %cst_7 {dimension_numbers = #tpu.dot_dimension_numbers<[1], [0], [0], [1], [0, 0, 1, 1], [], []>} : vector<8x128xbf16>, vector<128x64xbf16>, vector<8x64xf32> -> vector<8x64xf32>
    %c1 = arith.constant 1 : index
    %c0_8 = arith.constant 0 : index
    %18 = vector.load %arg2[%c1, %c0_8] : memref<4x128xf32, #tpu.memory_space<vmem>>, vector<1x64xf32>
    %19 = vector.broadcast %18 : vector<1x64xf32> to vector<8x64xf32>
    %20 = arith.addf %17, %19 : vector<8x64xf32>
    %cst_9 = arith.constant 0.000000e+00 : f32
    %21 = vector.broadcast %cst_9 : f32 to vector<8x64xf32>
    %22 = arith.maximumf %20, %21 : vector<8x64xf32>
    %23 = arith.truncf %22 : vector<8x64xf32> to vector<8x64xbf16>
    %24 = vector.extract_strided_slice %23 {offsets = [0, 0], sizes = [2, 64], strides = [1, 1]} : vector<8x64xbf16> to vector<2x64xbf16>
    %c0_10 = arith.constant 0 : index
    %c0_11 = arith.constant 0 : index
    %25 = vector.load %arg4[%c0_10, %c0_11] : memref<2x256xbf16, #tpu.memory_space<vmem>>, vector<2x64xbf16>
    tpu.vector_store %arg4[%c0_10, %c0_11], %24 {strides = array<i32>} : memref<2x256xbf16, #tpu.memory_space<vmem>>, vector<2x64xbf16>,
    %26 = vector.extract_strided_slice %23 {offsets = [2, 0], sizes = [2, 64], strides = [1, 1]} : vector<8x64xbf16> to vector<2x64xbf16>
    %c0_12 = arith.constant 0 : index
    %c64 = arith.constant 64 : index
    %27 = vector.load %arg4[%c0_12, %c64] : memref<2x256xbf16, #tpu.memory_space<vmem>>, vector<2x64xbf16>
    tpu.vector_store %arg4[%c0_12, %c64], %26 {strides = array<i32>} : memref<2x256xbf16, #tpu.memory_space<vmem>>, vector<2x64xbf16>,
    %28 = vector.extract_strided_slice %23 {offsets = [4, 0], sizes = [2, 64], strides = [1, 1]} : vector<8x64xbf16> to vector<2x64xbf16>
    %c0_13 = arith.constant 0 : index
    %c128 = arith.constant 128 : index
    %29 = vector.load %arg4[%c0_13, %c128] : memref<2x256xbf16, #tpu.memory_space<vmem>>, vector<2x64xbf16>
    tpu.vector_store %arg4[%c0_13, %c128], %28 {strides = array<i32>} : memref<2x256xbf16, #tpu.memory_space<vmem>>, vector<2x64xbf16>,
    %30 = vector.extract_strided_slice %23 {offsets = [6, 0], sizes = [2, 64], strides = [1, 1]} : vector<8x64xbf16> to vector<2x64xbf16>
    %c0_14 = arith.constant 0 : index
    %c192 = arith.constant 192 : index
    %31 = vector.load %arg4[%c0_14, %c192] : memref<2x256xbf16, #tpu.memory_space<vmem>>, vector<2x64xbf16>
    tpu.vector_store %arg4[%c0_14, %c192], %30 {strides = array<i32>} : memref<2x256xbf16, #tpu.memory_space<vmem>>, vector<2x64xbf16>,
    %c0_15 = arith.constant 0 : index
    %c0_16 = arith.constant 0 : index
    %32 = vector.load %arg4[%c0_15, %c0_16] : memref<2x256xbf16, #tpu.memory_space<vmem>>, vector<2x256xbf16>
    %c1664 = arith.constant 1664 : index
    %c0_17 = arith.constant 0 : index
    %33 = vector.load %arg1[%c1664, %c0_17] : memref<2048x128xbf16, #tpu.memory_space<vmem>>, vector<256x128xbf16>
    %cst_18 = arith.constant dense<0.000000e+00> : vector<2x128xf32>
    %34 = tpu.matmul %32, %33, %cst_18 {dimension_numbers = #tpu.dot_dimension_numbers<[1], [0], [0], [1], [0, 0, 1, 1], [], []>} : vector<2x256xbf16>, vector<256x128xbf16>, vector<2x128xf32> -> vector<2x128xf32>
    %c2 = arith.constant 2 : index
    %c0_19 = arith.constant 0 : index
    %35 = vector.load %arg2[%c2, %c0_19] : memref<4x128xf32, #tpu.memory_space<vmem>>, vector<1x128xf32>
    %36 = vector.broadcast %35 : vector<1x128xf32> to vector<2x128xf32>
    %37 = arith.addf %34, %36 : vector<2x128xf32>
    %cst_20 = arith.constant 0.000000e+00 : f32
    %38 = vector.broadcast %cst_20 : f32 to vector<2x128xf32>
    %39 = arith.maximumf %37, %38 : vector<2x128xf32>
    %40 = arith.truncf %39 : vector<2x128xf32> to vector<2x128xbf16>
    %c1920 = arith.constant 1920 : index
    %c0_21 = arith.constant 0 : index
    %41 = vector.load %arg1[%c1920, %c0_21] : memref<2048x128xbf16, #tpu.memory_space<vmem>>, vector<128x128xbf16>
    %cst_22 = arith.constant dense<0.000000e+00> : vector<2x128xf32>
    %42 = tpu.matmul %40, %41, %cst_22 {dimension_numbers = #tpu.dot_dimension_numbers<[1], [0], [0], [1], [0, 0, 1, 1], [], []>} : vector<2x128xbf16>, vector<128x128xbf16>, vector<2x128xf32> -> vector<2x128xf32>
    %c3 = arith.constant 3 : index
    %c0_23 = arith.constant 0 : index
    %43 = vector.load %arg2[%c3, %c0_23] : memref<4x128xf32, #tpu.memory_space<vmem>>, vector<1x128xf32>
    %44 = vector.broadcast %43 : vector<1x128xf32> to vector<2x128xf32>
    %45 = arith.addf %42, %44 : vector<2x128xf32>
    %cst_24 = arith.constant dense<0xFF800000> : vector<2xf32>
    %46 = vector.multi_reduction <maximumf>, %45, %cst_24 [1] : vector<2x128xf32> to vector<2xf32>
    %47 = vector.shape_cast %46 : vector<2xf32> to vector<2x1xf32>
    %48 = vector.broadcast %47 : vector<2x1xf32> to vector<2x128xf32>
    %49 = arith.subf %45, %48 : vector<2x128xf32>
    %50 = math.exp %49 : vector<2x128xf32>
    %cst_25 = arith.constant dense<0.000000e+00> : vector<2xf32>
    %51 = vector.multi_reduction <add>, %50, %cst_25 [1] : vector<2x128xf32> to vector<2xf32>
    %52 = vector.shape_cast %51 : vector<2xf32> to vector<2x1xf32>
    %53 = tpu.reciprocal %52 {approx = true} : vector<2x1xf32> -> vector<2x1xf32>
    %54 = vector.broadcast %53 : vector<2x1xf32> to vector<2x128xf32>
    %55 = arith.mulf %50, %54 : vector<2x128xf32>
    %c0_26 = arith.constant 0 : index
    %c0_27 = arith.constant 0 : index
    %56 = vector.load %arg3[%c0_26, %c0_27] : memref<2x128xf32, #tpu.memory_space<vmem>>, vector<2x128xf32>
    tpu.vector_store %arg3[%c0_26, %c0_27], %55 {strides = array<i32>} : memref<2x128xf32, #tpu.memory_space<vmem>>, vector<2x128xf32>,
    return
  }
}

</mosaic_0001>

<llo_original>
// kernel: forward_pallas.1
$region0: #{forward_pallas.1}
  #allocation0 [shape = 'u32[]', space=smem, size = 0x4, offset = 0x4, fixed_abs, tag = 'smem constant byte address 0x4 - core index']
  #allocation1 [shape = 'u32[144,128]{1,0:T(1,128)}', space=vmem, size = 0x12000, scoped, tag = 'internal scratch']
  #allocation2 [shape = 'bf16[2,256]{1,0:T(2,128)(2,1)}', space=vmem, size = 0x400, scoped, tag = 'scratch operand']
  %s0 = inlined_call_operand.vmem [shape: s32[8,1536], index: 0, kind: input, shape index: {}]
  %s1 = inlined_call_operand.vmem [shape: bf16[2048,128], index: 1, kind: input, shape index: {}]
  %s2 = inlined_call_operand.vmem [shape: f32[4,128], index: 2, kind: input, shape index: {}]
  %s3 = inlined_call_operand.hbm [shape: f32[2,128], index: 3, kind: output, shape index: {}]
  %s4 = sld [smem:[#allocation0]]
  $region22: #{forward_pallas.1} parent=0
    _
  %s6 = ssub.s32 1, %s4
  %s7 = scalar_select 0, %s6, %s4
  $region1: #{forward_pallas.1} parent=0
    #allocation3 [shape = 'u8[1024]{0}', space=vmem, size = 0x400, scoped, tag = 'output window, operand 0, single buffered']
    #allocation4 [shape = 's32[1]{0}', space=sflag, size = 0x4, scoped, tag = 'scoped memory for forward_pallas.1']
    %8 = vsyncpa [#allocation4], 0
    // Predicated region
    $region2: #{forward_pallas.1} parent=1 // pred_check
      _
    $region3: #{forward_pallas.1} parent=1 // pred_check_branch
      %10 = sbr.rel (0) target = $region5
    $region4: #{forward_pallas.1} parent=1 // pred_region
      _
    $region5: #{forward_pallas.1} parent=1 // pred_fallthru
      _
    // Predicated region
    $region6: #{forward_pallas.1} parent=1 // pred_check
      _
    $region7: #{forward_pallas.1} parent=1 // pred_check_branch
      %12 = sbr.rel (0) target = $region9
    $region8: #{forward_pallas.1} parent=1 // pred_region
      _
    $region9: #{forward_pallas.1} parent=1 // pred_fallthru
      _
    // Predicated region
    $region10: #{forward_pallas.1} parent=1 // pred_check
      _
    $region11: #{forward_pallas.1} parent=1 // pred_check_branch
      %14 = sbr.rel (0) target = $region13
    $region12: #{forward_pallas.1} parent=1 // pred_region
      _
    $region13: #{forward_pallas.1} parent=1 // pred_fallthru
      _
    %v16 = vlaneseq
    %v17 = vand.u32 %v16, 127
    %v18 = vadd.s32 %v17, 128
    %v19 = vadd.s32 %v17, 256
    %v20 = vadd.s32 %v17, 384
    %v21 = vadd.s32 %v17, 512
    %v22 = vadd.s32 %v17, 640
    %v23 = vadd.s32 %v17, 768
    %v24 = vadd.s32 %v17, 896
    %v25 = vadd.s32 %v17, 1024
    %v26 = vadd.s32 %v17, 1152
    %v27 = vadd.s32 %v17, 1280
    %v28 = vadd.s32 %v17, 1408
    %v29 = vand.u32 %v17, 31
    %v30 = vand.u32 %v18, 31
    %v31 = vand.u32 %v19, 31
    %v32 = vand.u32 %v20, 31
    %v33 = vand.u32 %v21, 31
    %v34 = vand.u32 %v22, 31
    %v35 = vand.u32 %v23, 31
    %v36 = vand.u32 %v24, 31
    %v37 = vand.u32 %v25, 31
    %v38 = vand.u32 %v26, 31
    %v39 = vand.u32 %v27, 31
    %v40 = vand.u32 %v28, 31
    %v41 = vld [vmem:[%s0] sm:$0xff]
    %v42 = vld [vmem:[%s0 + $0x8] sm:$0xff]
    %v43 = vld [vmem:[%s0 + $0x10] sm:$0xff]
    %v44 = vld [vmem:[%s0 + $0x18] sm:$0xff]
    %v45 = vld [vmem:[%s0 + $0x20] sm:$0xff]
    %v46 = vld [vmem:[%s0 + $0x28] sm:$0xff]
    %v47 = vld [vmem:[%s0 + $0x30] sm:$0xff]
    %v48 = vld [vmem:[%s0 + $0x38] sm:$0xff]
    %v49 = vld [vmem:[%s0 + $0x40] sm:$0xff]
    %v50 = vld [vmem:[%s0 + $0x48] sm:$0xff]
    %v51 = vld [vmem:[%s0 + $0x50] sm:$0xff]
    %v52 = vld [vmem:[%s0 + $0x58] sm:$0xff]
    %vm53 = vcmp.eq.s32.totalorder %v41, %v29
    %vm54 = vcmp.eq.s32.totalorder %v42, %v30
    %vm55 = vcmp.eq.s32.totalorder %v43, %v31
    %vm56 = vcmp.eq.s32.totalorder %v44, %v32
    %vm57 = vcmp.eq.s32.totalorder %v45, %v33
    %vm58 = vcmp.eq.s32.totalorder %v46, %v34
    %vm59 = vcmp.eq.s32.totalorder %v47, %v35
    %vm60 = vcmp.eq.s32.totalorder %v48, %v36
    %vm61 = vcmp.eq.s32.totalorder %v49, %v37
    %vm62 = vcmp.eq.s32.totalorder %v50, %v38
    %vm63 = vcmp.eq.s32.totalorder %v51, %v39
    %vm64 = vcmp.eq.s32.totalorder %v52, %v40
    %v65 = vsel %vm53, 1, 0
    %v66 = vsel %vm54, 1, 0
    %v67 = vsel %vm55, 1, 0
    %v68 = vsel %vm56, 1, 0
    %v69 = vsel %vm57, 1, 0
    %v70 = vsel %vm58, 1, 0
    %v71 = vsel %vm59, 1, 0
    %v72 = vsel %vm60, 1, 0
    %v73 = vsel %vm61, 1, 0
    %v74 = vsel %vm62, 1, 0
    %v75 = vsel %vm63, 1, 0
    %v76 = vsel %vm64, 1, 0
    %v77 = vcvt.s32.f32 %v65
    %v78 = vcvt.s32.f32 %v66
    %v79 = vcvt.s32.f32 %v67
    %v80 = vcvt.s32.f32 %v68
    %v81 = vcvt.s32.f32 %v69
    %v82 = vcvt.s32.f32 %v70
    %v83 = vcvt.s32.f32 %v71
    %v84 = vcvt.s32.f32 %v72
    %v85 = vcvt.s32.f32 %v73
    %v86 = vcvt.s32.f32 %v74
    %v87 = vcvt.s32.f32 %v75
    %v88 = vcvt.s32.f32 %v76
    %v89 = vpack.c.bf16 %v77, %v77
    %v90 = vpack.c.bf16 %v78, %v78
    %v91 = vpack.c.bf16 %v79, %v79
    %v92 = vpack.c.bf16 %v80, %v80
    %v93 = vpack.c.bf16 %v81, %v81
    %v94 = vpack.c.bf16 %v82, %v82
    %v95 = vpack.c.bf16 %v83, %v83
    %v96 = vpack.c.bf16 %v84, %v84
    %v97 = vpack.c.bf16 %v85, %v85
    %v98 = vpack.c.bf16 %v86, %v86
    %v99 = vpack.c.bf16 %v87, %v87
    %v100 = vpack.c.bf16 %v88, %v88
    %v101 = vld [vmem:[%s1] sm:$0xf]
    %v102 = vld [vmem:[%s1 + $0x4] sm:$0xf]
    %v103 = vld [vmem:[%s1 + $0x8] sm:$0xf]
    %v104 = vld [vmem:[%s1 + $0xc] sm:$0xf]
    %v105 = vld [vmem:[%s1 + $0x10] sm:$0xf]
    %v106 = vld [vmem:[%s1 + $0x14] sm:$0xf]
    %v107 = vld [vmem:[%s1 + $0x18] sm:$0xf]
    %v108 = vld [vmem:[%s1 + $0x1c] sm:$0xf]
    %v109 = vld [vmem:[%s1 + $0x20] sm:$0xf]
    %v110 = vld [vmem:[%s1 + $0x24] sm:$0xf]
    %v111 = vld [vmem:[%s1 + $0x28] sm:$0xf]
    %v112 = vld [vmem:[%s1 + $0x2c] sm:$0xf]
    %v113 = vld [vmem:[%s1 + $0x30] sm:$0xf]
    %v114 = vld [vmem:[%s1 + $0x34] sm:$0xf]
    %v115 = vld [vmem:[%s1 + $0x38] sm:$0xf]
    %v116 = vld [vmem:[%s1 + $0x3c] sm:$0xf]
    %v117 = vld [vmem:[%s1 + $0x40] sm:$0xf]
    %v118 = vld [vmem:[%s1 + $0x44] sm:$0xf]
    %v119 = vld [vmem:[%s1 + $0x48] sm:$0xf]
    %v120 = vld [vmem:[%s1 + $0x4c] sm:$0xf]
    %v121 = vld [vmem:[%s1 + $0x50] sm:$0xf]
    %v122 = vld [vmem:[%s1 + $0x54] sm:$0xf]
    %v123 = vld [vmem:[%s1 + $0x58] sm:$0xf]
    %v124 = vld [vmem:[%s1 + $0x5c] sm:$0xf]
    %v125 = vld [vmem:[%s1 + $0x60] sm:$0xf]
    %v126 = vld [vmem:[%s1 + $0x64] sm:$0xf]
    %v127 = vld [vmem:[%s1 + $0x68] sm:$0xf]
    %v128 = vld [vmem:[%s1 + $0x6c] sm:$0xf]
    %v129 = vld [vmem:[%s1 + $0x70] sm:$0xf]
    %v130 = vld [vmem:[%s1 + $0x74] sm:$0xf]
    %v131 = vld [vmem:[%s1 + $0x78] sm:$0xf]
    %v132 = vld [vmem:[%s1 + $0x7c] sm:$0xf]
    %v133 = vld [vmem:[%s1 + $0x80] sm:$0xf]
    %v134 = vld [vmem:[%s1 + $0x84] sm:$0xf]
    %v135 = vld [vmem:[%s1 + $0x88] sm:$0xf]
    %v136 = vld [vmem:[%s1 + $0x8c] sm:$0xf]
    %v137 = vld [vmem:[%s1 + $0x90] sm:$0xf]
    %v138 = vld [vmem:[%s1 + $0x94] sm:$0xf]
    %v139 = vld [vmem:[%s1 + $0x98] sm:$0xf]
    %v140 = vld [vmem:[%s1 + $0x9c] sm:$0xf]
    %v141 = vld [vmem:[%s1 + $0xa0] sm:$0xf]
    %v142 = vld [vmem:[%s1 + $0xa4] sm:$0xf]
    %v143 = vld [vmem:[%s1 + $0xa8] sm:$0xf]
    %v144 = vld [vmem:[%s1 + $0xac] sm:$0xf]
    %v145 = vld [vmem:[%s1 + $0xb0] sm:$0xf]
    %v146 = vld [vmem:[%s1 + $0xb4] sm:$0xf]
    %v147 = vld [vmem:[%s1 + $0xb8] sm:$0xf]
    %v148 = vld [vmem:[%s1 + $0xbc] sm:$0xf]
    %v149 = vld [vmem:[%s1 + $0xc0] sm:$0xf]
    %v150 = vld [vmem:[%s1 + $0xc4] sm:$0xf]
    %v151 = vld [vmem:[%s1 + $0xc8] sm:$0xf]
    %v152 = vld [vmem:[%s1 + $0xcc] sm:$0xf]
    %v153 = vld [vmem:[%s1 + $0xd0] sm:$0xf]
    %v154 = vld [vmem:[%s1 + $0xd4] sm:$0xf]
    %v155 = vld [vmem:[%s1 + $0xd8] sm:$0xf]
    %v156 = vld [vmem:[%s1 + $0xdc] sm:$0xf]
    %v157 = vld [vmem:[%s1 + $0xe0] sm:$0xf]
    %v158 = vld [vmem:[%s1 + $0xe4] sm:$0xf]
    %v159 = vld [vmem:[%s1 + $0xe8] sm:$0xf]
    %v160 = vld [vmem:[%s1 + $0xec] sm:$0xf]
    %v161 = vld [vmem:[%s1 + $0xf0] sm:$0xf]
    %v162 = vld [vmem:[%s1 + $0xf4] sm:$0xf]
    %v163 = vld [vmem:[%s1 + $0xf8] sm:$0xf]
    %v164 = vld [vmem:[%s1 + $0xfc] sm:$0xf]
    %v165 = vld [vmem:[%s1 + $0x100] sm:$0xf]
    %v166 = vld [vmem:[%s1 + $0x104] sm:$0xf]
    %v167 = vld [vmem:[%s1 + $0x108] sm:$0xf]
    %v168 = vld [vmem:[%s1 + $0x10c] sm:$0xf]
    %v169 = vld [vmem:[%s1 + $0x110] sm:$0xf]
    %v170 = vld [vmem:[%s1 + $0x114] sm:$0xf]
    %v171 = vld [vmem:[%s1 + $0x118] sm:$0xf]
    %v172 = vld [vmem:[%s1 + $0x11c] sm:$0xf]
    %v173 = vld [vmem:[%s1 + $0x120] sm:$0xf]
    %v174 = vld [vmem:[%s1 + $0x124] sm:$0xf]
    %v175 = vld [vmem:[%s1 + $0x128] sm:$0xf]
    %v176 = vld [vmem:[%s1 + $0x12c] sm:$0xf]
    %v177 = vld [vmem:[%s1 + $0x130] sm:$0xf]
    %v178 = vld [vmem:[%s1 + $0x134] sm:$0xf]
    %v179 = vld [vmem:[%s1 + $0x138] sm:$0xf]
    %v180 = vld [vmem:[%s1 + $0x13c] sm:$0xf]
    %v181 = vld [vmem:[%s1 + $0x140] sm:$0xf]
    %v182 = vld [vmem:[%s1 + $0x144] sm:$0xf]
    %v183 = vld [vmem:[%s1 + $0x148] sm:$0xf]
    %v184 = vld [vmem:[%s1 + $0x14c] sm:$0xf]
    %v185 = vld [vmem:[%s1 + $0x150] sm:$0xf]
    %v186 = vld [vmem:[%s1 + $0x154] sm:$0xf]
    %v187 = vld [vmem:[%s1 + $0x158] sm:$0xf]
    %v188 = vld [vmem:[%s1 + $0x15c] sm:$0xf]
    %v189 = vld [vmem:[%s1 + $0x160] sm:$0xf]
    %v190 = vld [vmem:[%s1 + $0x164] sm:$0xf]
    %v191 = vld [vmem:[%s1 + $0x168] sm:$0xf]
    %v192 = vld [vmem:[%s1 + $0x16c] sm:$0xf]
    %v193 = vld [vmem:[%s1 + $0x170] sm:$0xf]
    %v194 = vld [vmem:[%s1 + $0x174] sm:$0xf]
    %v195 = vld [vmem:[%s1 + $0x178] sm:$0xf]
    %v196 = vld [vmem:[%s1 + $0x17c] sm:$0xf]
    %v197 = vld [vmem:[%s1 + $0x180] sm:$0xf]
    %v198 = vld [vmem:[%s1 + $0x184] sm:$0xf]
    %v199 = vld [vmem:[%s1 + $0x188] sm:$0xf]
    %v200 = vld [vmem:[%s1 + $0x18c] sm:$0xf]
    %v201 = vld [vmem:[%s1 + $0x190] sm:$0xf]
    %v202 = vld [vmem:[%s1 + $0x194] sm:$0xf]
    %v203 = vld [vmem:[%s1 + $0x198] sm:$0xf]
    %v204 = vld [vmem:[%s1 + $0x19c] sm:$0xf]
    %v205 = vld [vmem:[%s1 + $0x1a0] sm:$0xf]
    %v206 = vld [vmem:[%s1 + $0x1a4] sm:$0xf]
    %v207 = vld [vmem:[%s1 + $0x1a8] sm:$0xf]
    %v208 = vld [vmem:[%s1 + $0x1ac] sm:$0xf]
    %v209 = vld [vmem:[%s1 + $0x1b0] sm:$0xf]
    %v210 = vld [vmem:[%s1 + $0x1b4] sm:$0xf]
    %v211 = vld [vmem:[%s1 + $0x1b8] sm:$0xf]
    %v212 = vld [vmem:[%s1 + $0x1bc] sm:$0xf]
    %v213 = vld [vmem:[%s1 + $0x1c0] sm:$0xf]
    %v214 = vld [vmem:[%s1 + $0x1c4] sm:$0xf]
    %v215 = vld [vmem:[%s1 + $0x1c8] sm:$0xf]
    %v216 = vld [vmem:[%s1 + $0x1cc] sm:$0xf]
    %v217 = vld [vmem:[%s1 + $0x1d0] sm:$0xf]
    %v218 = vld [vmem:[%s1 + $0x1d4] sm:$0xf]
    %v219 = vld [vmem:[%s1 + $0x1d8] sm:$0xf]
    %v220 = vld [vmem:[%s1 + $0x1dc] sm:$0xf]
    %v221 = vld [vmem:[%s1 + $0x1e0] sm:$0xf]
    %v222 = vld [vmem:[%s1 + $0x1e4] sm:$0xf]
    %v223 = vld [vmem:[%s1 + $0x1e8] sm:$0xf]
    %v224 = vld [vmem:[%s1 + $0x1ec] sm:$0xf]
    %v225 = vld [vmem:[%s1 + $0x1f0] sm:$0xf]
    %v226 = vld [vmem:[%s1 + $0x1f4] sm:$0xf]
    %v227 = vld [vmem:[%s1 + $0x1f8] sm:$0xf]
    %v228 = vld [vmem:[%s1 + $0x1fc] sm:$0xf]
    %v229 = vld [vmem:[%s1 + $0x200] sm:$0xf]
    %v230 = vld [vmem:[%s1 + $0x204] sm:$0xf]
    %v231 = vld [vmem:[%s1 + $0x208] sm:$0xf]
    %v232 = vld [vmem:[%s1 + $0x20c] sm:$0xf]
    %v233 = vld [vmem:[%s1 + $0x210] sm:$0xf]
    %v234 = vld [vmem:[%s1 + $0x214] sm:$0xf]
    %v235 = vld [vmem:[%s1 + $0x218] sm:$0xf]
    %v236 = vld [vmem:[%s1 + $0x21c] sm:$0xf]
    %v237 = vld [vmem:[%s1 + $0x220] sm:$0xf]
    %v238 = vld [vmem:[%s1 + $0x224] sm:$0xf]
    %v239 = vld [vmem:[%s1 + $0x228] sm:$0xf]
    %v240 = vld [vmem:[%s1 + $0x22c] sm:$0xf]
    %v241 = vld [vmem:[%s1 + $0x230] sm:$0xf]
    %v242 = vld [vmem:[%s1 + $0x234] sm:$0xf]
    %v243 = vld [vmem:[%s1 + $0x238] sm:$0xf]
    %v244 = vld [vmem:[%s1 + $0x23c] sm:$0xf]
    %v245 = vld [vmem:[%s1 + $0x240] sm:$0xf]
    %v246 = vld [vmem:[%s1 + $0x244] sm:$0xf]
    %v247 = vld [vmem:[%s1 + $0x248] sm:$0xf]
    %v248 = vld [vmem:[%s1 + $0x24c] sm:$0xf]
    %v249 = vld [vmem:[%s1 + $0x250] sm:$0xf]
    %v250 = vld [vmem:[%s1 + $0x254] sm:$0xf]
    %v251 = vld [vmem:[%s1 + $0x258] sm:$0xf]
    %v252 = vld [vmem:[%s1 + $0x25c] sm:$0xf]
    %v253 = vld [vmem:[%s1 + $0x260] sm:$0xf]
    %v254 = vld [vmem:[%s1 + $0x264] sm:$0xf]
    %v255 = vld [vmem:[%s1 + $0x268] sm:$0xf]
    %v256 = vld [vmem:[%s1 + $0x26c] sm:$0xf]
    %v257 = vld [vmem:[%s1 + $0x270] sm:$0xf]
    %v258 = vld [vmem:[%s1 + $0x274] sm:$0xf]
    %v259 = vld [vmem:[%s1 + $0x278] sm:$0xf]
    %v260 = vld [vmem:[%s1 + $0x27c] sm:$0xf]
    %v261 = vld [vmem:[%s1 + $0x280] sm:$0xf]
    %v262 = vld [vmem:[%s1 + $0x284] sm:$0xf]
    %v263 = vld [vmem:[%s1 + $0x288] sm:$0xf]
    %v264 = vld [vmem:[%s1 + $0x28c] sm:$0xf]
    %v265 = vld [vmem:[%s1 + $0x290] sm:$0xf]
    %v266 = vld [vmem:[%s1 + $0x294] sm:$0xf]
    %v267 = vld [vmem:[%s1 + $0x298] sm:$0xf]
    %v268 = vld [vmem:[%s1 + $0x29c] sm:$0xf]
    %v269 = vld [vmem:[%s1 + $0x2a0] sm:$0xf]
    %v270 = vld [vmem:[%s1 + $0x2a4] sm:$0xf]
    %v271 = vld [vmem:[%s1 + $0x2a8] sm:$0xf]
    %v272 = vld [vmem:[%s1 + $0x2ac] sm:$0xf]
    %v273 = vld [vmem:[%s1 + $0x2b0] sm:$0xf]
    %v274 = vld [vmem:[%s1 + $0x2b4] sm:$0xf]
    %v275 = vld [vmem:[%s1 + $0x2b8] sm:$0xf]
    %v276 = vld [vmem:[%s1 + $0x2bc] sm:$0xf]
    %v277 = vld [vmem:[%s1 + $0x2c0] sm:$0xf]
    %v278 = vld [vmem:[%s1 + $0x2c4] sm:$0xf]
    %v279 = vld [vmem:[%s1 + $0x2c8] sm:$0xf]
    %v280 = vld [vmem:[%s1 + $0x2cc] sm:$0xf]
    %v281 = vld [vmem:[%s1 + $0x2d0] sm:$0xf]
    %v282 = vld [vmem:[%s1 + $0x2d4] sm:$0xf]
    %v283 = vld [vmem:[%s1 + $0x2d8] sm:$0xf]
    %v284 = vld [vmem:[%s1 + $0x2dc] sm:$0xf]
    %v285 = vld [vmem:[%s1 + $0x2e0] sm:$0xf]
    %v286 = vld [vmem:[%s1 + $0x2e4] sm:$0xf]
    %v287 = vld [vmem:[%s1 + $0x2e8] sm:$0xf]
    %v288 = vld [vmem:[%s1 + $0x2ec] sm:$0xf]
    %v289 = vld [vmem:[%s1 + $0x2f0] sm:$0xf]
    %v290 = vld [vmem:[%s1 + $0x2f4] sm:$0xf]
    %v291 = vld [vmem:[%s1 + $0x2f8] sm:$0xf]
    %v292 = vld [vmem:[%s1 + $0x2fc] sm:$0xf]
    %v293 = vld [vmem:[%s2] sm:$0x1]
    %v294 = vlaneseq
    %v295 = vshrl.u32 %v294, 7
    %v296 = vsub.s32 0, %v295
    %v297 = vrot.slane %v293, %v296
    %v490 = vunpack.c.l.b16 %v101
    %v491 = vunpack.c.l.b16 %v102
    %v492 = vunpack.c.l.b16 %v103
    %v493 = vunpack.c.l.b16 %v104
    %v494 = vunpack.c.l.b16 %v105
    %v495 = vunpack.c.l.b16 %v106
    %v496 = vunpack.c.l.b16 %v107
    %v497 = vunpack.c.l.b16 %v108
    %v498 = vunpack.c.l.b16 %v109
    %v499 = vunpack.c.l.b16 %v110
    %v500 = vunpack.c.l.b16 %v111
    %v501 = vunpack.c.l.b16 %v112
    %v502 = vunpack.c.l.b16 %v113
    %v503 = vunpack.c.l.b16 %v114
    %v504 = vunpack.c.l.b16 %v115
    %v505 = vunpack.c.l.b16 %v116
    %v506 = vunpack.c.l.b16 %v117
    %v507 = vunpack.c.l.b16 %v118
    %v508 = vunpack.c.l.b16 %v119
    %v509 = vunpack.c.l.b16 %v120
    %v510 = vunpack.c.l.b16 %v121
    %v511 = vunpack.c.l.b16 %v122
    %v512 = vunpack.c.l.b16 %v123
    %v513 = vunpack.c.l.b16 %v124
    %v514 = vunpack.c.l.b16 %v125
    %v515 = vunpack.c.l.b16 %v126
    %v516 = vunpack.c.l.b16 %v127
    %v517 = vunpack.c.l.b16 %v128
    %v518 = vunpack.c.l.b16 %v129
    %v519 = vunpack.c.l.b16 %v130
    %v520 = vunpack.c.l.b16 %v131
    %v521 = vunpack.c.l.b16 %v132
    %v522 = vunpack.c.l.b16 %v133
    %v523 = vunpack.c.l.b16 %v134
    %v524 = vunpack.c.l.b16 %v135
    %v525 = vunpack.c.l.b16 %v136
    %v526 = vunpack.c.l.b16 %v137
    %v527 = vunpack.c.l.b16 %v138
    %v528 = vunpack.c.l.b16 %v139
    %v529 = vunpack.c.l.b16 %v140
    %v530 = vunpack.c.l.b16 %v141
    %v531 = vunpack.c.l.b16 %v142
    %v532 = vunpack.c.l.b16 %v143
    %v533 = vunpack.c.l.b16 %v144
    %v534 = vunpack.c.l.b16 %v145
    %v535 = vunpack.c.l.b16 %v146
    %v536 = vunpack.c.l.b16 %v147
    %v537 = vunpack.c.l.b16 %v148
    %v538 = vunpack.c.l.b16 %v149
    %v539 = vunpack.c.l.b16 %v150
    %v540 = vunpack.c.l.b16 %v151
    %v541 = vunpack.c.l.b16 %v152
    %v542 = vunpack.c.l.b16 %v153
    %v543 = vunpack.c.l.b16 %v154
    %v544 = vunpack.c.l.b16 %v155
    %v545 = vunpack.c.l.b16 %v156
    %v546 = vunpack.c.l.b16 %v157
    %v547 = vunpack.c.l.b16 %v158
    %v548 = vunpack.c.l.b16 %v159
    %v549 = vunpack.c.l.b16 %v160
    %v550 = vunpack.c.l.b16 %v161
    %v551 = vunpack.c.l.b16 %v162
    %v552 = vunpack.c.l.b16 %v163
    %v553 = vunpack.c.l.b16 %v164
    %v554 = vunpack.c.l.b16 %v165
    %v555 = vunpack.c.l.b16 %v166
    %v556 = vunpack.c.l.b16 %v167
    %v557 = vunpack.c.l.b16 %v168
    %v558 = vunpack.c.l.b16 %v169
    %v559 = vunpack.c.l.b16 %v170
    %v560 = vunpack.c.l.b16 %v171
    %v561 = vunpack.c.l.b16 %v172
    %v562 = vunpack.c.l.b16 %v173
    %v563 = vunpack.c.l.b16 %v174
    %v564 = vunpack.c.l.b16 %v175
    %v565 = vunpack.c.l.b16 %v176
    %v566 = vunpack.c.l.b16 %v177
    %v567 = vunpack.c.l.b16 %v178
    %v568 = vunpack.c.l.b16 %v179
    %v569 = vunpack.c.l.b16 %v180
    %v570 = vunpack.c.l.b16 %v181
    %v571 = vunpack.c.l.b16 %v182
    %v572 = vunpack.c.l.b16 %v183
    %v573 = vunpack.c.l.b16 %v184
    %v574 = vunpack.c.l.b16 %v185
    %v575 = vunpack.c.l.b16 %v186
    %v576 = vunpack.c.l.b16 %v187
    %v577 = vunpack.c.l.b16 %v188
    %v578 = vunpack.c.l.b16 %v189
    %v579 = vunpack.c.l.b16 %v190
    %v580 = vunpack.c.l.b16 %v191
    %v581 = vunpack.c.l.b16 %v192
    %v582 = vunpack.c.l.b16 %v193
    %v583 = vunpack.c.l.b16 %v194
    %v584 = vunpack.c.l.b16 %v195
    %v585 = vunpack.c.l.b16 %v196
    %v586 = vunpack.c.l.b16 %v197
    %v587 = vunpack.c.l.b16 %v198
    %v588 = vunpack.c.l.b16 %v199
    %v589 = vunpack.c.l.b16 %v200
    %v590 = vunpack.c.l.b16 %v201
    %v591 = vunpack.c.l.b16 %v202
    %v592 = vunpack.c.l.b16 %v203
    %v593 = vunpack.c.l.b16 %v204
    %v594 = vunpack.c.l.b16 %v205
    %v595 = vunpack.c.l.b16 %v206
    %v596 = vunpack.c.l.b16 %v207
    %v597 = vunpack.c.l.b16 %v208
    %v598 = vunpack.c.l.b16 %v209
    %v599 = vunpack.c.l.b16 %v210
    %v600 = vunpack.c.l.b16 %v211
    %v601 = vunpack.c.l.b16 %v212
    %v602 = vunpack.c.l.b16 %v213
    %v603 = vunpack.c.l.b16 %v214
    %v604 = vunpack.c.l.b16 %v215
    %v605 = vunpack.c.l.b16 %v216
    %v606 = vunpack.c.l.b16 %v217
    %v607 = vunpack.c.l.b16 %v218
    %v608 = vunpack.c.l.b16 %v219
    %v609 = vunpack.c.l.b16 %v220
    %v610 = vunpack.c.l.b16 %v221
    %v611 = vunpack.c.l.b16 %v222
    %v612 = vunpack.c.l.b16 %v223
    %v613 = vunpack.c.l.b16 %v224
    %v614 = vunpack.c.l.b16 %v225
    %v615 = vunpack.c.l.b16 %v226
    %v616 = vunpack.c.l.b16 %v227
    %v617 = vunpack.c.l.b16 %v228
    %v618 = vunpack.c.l.b16 %v229
    %v619 = vunpack.c.l.b16 %v230
    %v620 = vunpack.c.l.b16 %v231
    %v621 = vunpack.c.l.b16 %v232
    %v622 = vunpack.c.l.b16 %v233
    %v623 = vunpack.c.l.b16 %v234
    %v624 = vunpack.c.l.b16 %v235
    %v625 = vunpack.c.l.b16 %v236
    %v626 = vunpack.c.l.b16 %v237
    %v627 = vunpack.c.l.b16 %v238
    %v628 = vunpack.c.l.b16 %v239
    %v629 = vunpack.c.l.b16 %v240
    %v630 = vunpack.c.l.b16 %v241
    %v631 = vunpack.c.l.b16 %v242
    %v632 = vunpack.c.l.b16 %v243
    %v633 = vunpack.c.l.b16 %v244
    %v634 = vunpack.c.l.b16 %v245
    %v635 = vunpack.c.l.b16 %v246
    %v636 = vunpack.c.l.b16 %v247
    %v637 = vunpack.c.l.b16 %v248
    %v638 = vunpack.c.l.b16 %v249
    %v639 = vunpack.c.l.b16 %v250
    %v640 = vunpack.c.l.b16 %v251
    %v641 = vunpack.c.l.b16 %v252
    %v642 = vunpack.c.l.b16 %v253
    %v643 = vunpack.c.l.b16 %v254
    %v644 = vunpack.c.l.b16 %v255
    %v645 = vunpack.c.l.b16 %v256
    %v646 = vunpack.c.l.b16 %v257
    %v647 = vunpack.c.l.b16 %v258
    %v648 = vunpack.c.l.b16 %v259
    %v649 = vunpack.c.l.b16 %v260
    %v650 = vunpack.c.l.b16 %v261
    %v651 = vunpack.c.l.b16 %v262
    %v652 = vunpack.c.l.b16 %v263
    %v653 = vunpack.c.l.b16 %v264
    %v654 = vunpack.c.l.b16 %v265
    %v655 = vunpack.c.l.b16 %v266
    %v656 = vunpack.c.l.b16 %v267
    %v657 = vunpack.c.l.b16 %v268
    %v658 = vunpack.c.l.b16 %v269
    %v659 = vunpack.c.l.b16 %v270
    %v660 = vunpack.c.l.b16 %v271
    %v661 = vunpack.c.l.b16 %v272
    %v662 = vunpack.c.l.b16 %v273
    %v663 = vunpack.c.l.b16 %v274
    %v664 = vunpack.c.l.b16 %v275
    %v665 = vunpack.c.l.b16 %v276
    %v666 = vunpack.c.l.b16 %v277
    %v667 = vunpack.c.l.b16 %v278
    %v668 = vunpack.c.l.b16 %v279
    %v669 = vunpack.c.l.b16 %v280
    %v670 = vunpack.c.l.b16 %v281
    %v671 = vunpack.c.l.b16 %v282
    %v672 = vunpack.c.l.b16 %v283
    %v673 = vunpack.c.l.b16 %v284
    %v674 = vunpack.c.l.b16 %v285
    %v675 = vunpack.c.l.b16 %v286
    %v676 = vunpack.c.l.b16 %v287
    %v677 = vunpack.c.l.b16 %v288
    %v678 = vunpack.c.l.b16 %v289
    %v679 = vunpack.c.l.b16 %v290
    %v680 = vunpack.c.l.b16 %v291
    %v681 = vunpack.c.l.b16 %v292
    %v682 = vpack.c.b16 %v491, %v490
    %v683 = vpack.c.b16 %v493, %v492
    %v684 = vpack.c.b16 %v495, %v494
    %v685 = vpack.c.b16 %v497, %v496
    %v686 = vpack.c.b16 %v499, %v498
    %v687 = vpack.c.b16 %v501, %v500
    %v688 = vpack.c.b16 %v503, %v502
    %v689 = vpack.c.b16 %v505, %v504
    %v690 = vpack.c.b16 %v507, %v506
    %v691 = vpack.c.b16 %v509, %v508
    %v692 = vpack.c.b16 %v511, %v510
    %v693 = vpack.c.b16 %v513, %v512
    %v694 = vpack.c.b16 %v515, %v514
    %v695 = vpack.c.b16 %v517, %v516
    %v696 = vpack.c.b16 %v519, %v518
    %v697 = vpack.c.b16 %v521, %v520
    %v698 = vpack.c.b16 %v523, %v522
    %v699 = vpack.c.b16 %v525, %v524
    %v700 = vpack.c.b16 %v527, %v526
    %v701 = vpack.c.b16 %v529, %v528
    %v702 = vpack.c.b16 %v531, %v530
    %v703 = vpack.c.b16 %v533, %v532
    %v704 = vpack.c.b16 %v535, %v534
    %v705 = vpack.c.b16 %v537, %v536
    %v706 = vpack.c.b16 %v539, %v538
    %v707 = vpack.c.b16 %v541, %v540
    %v708 = vpack.c.b16 %v543, %v542
    %v709 = vpack.c.b16 %v545, %v544
    %v710 = vpack.c.b16 %v547, %v546
    %v711 = vpack.c.b16 %v549, %v548
    %v712 = vpack.c.b16 %v551, %v550
    %v713 = vpack.c.b16 %v553, %v552
    %v714 = vpack.c.b16 %v555, %v554
    %v715 = vpack.c.b16 %v557, %v556
    %v716 = vpack.c.b16 %v559, %v558
    %v717 = vpack.c.b16 %v561, %v560
    %v718 = vpack.c.b16 %v563, %v562
    %v719 = vpack.c.b16 %v565, %v564
    %v720 = vpack.c.b16 %v567, %v566
    %v721 = vpack.c.b16 %v569, %v568
    %v722 = vpack.c.b16 %v571, %v570
    %v723 = vpack.c.b16 %v573, %v572
    %v724 = vpack.c.b16 %v575, %v574
    %v725 = vpack.c.b16 %v577, %v576
    %v726 = vpack.c.b16 %v579, %v578
    %v727 = vpack.c.b16 %v581, %v580
    %v728 = vpack.c.b16 %v583, %v582
    %v729 = vpack.c.b16 %v585, %v584
    %v730 = vpack.c.b16 %v587, %v586
    %v731 = vpack.c.b16 %v589, %v588
    %v732 = vpack.c.b16 %v591, %v590
    %v733 = vpack.c.b16 %v593, %v592
    %v734 = vpack.c.b16 %v595, %v594
    %v735 = vpack.c.b16 %v597, %v596
    %v736 = vpack.c.b16 %v599, %v598
    %v737 = vpack.c.b16 %v601, %v600
    %v738 = vpack.c.b16 %v603, %v602
    %v739 = vpack.c.b16 %v605, %v604
    %v740 = vpack.c.b16 %v607, %v606
    %v741 = vpack.c.b16 %v609, %v608
    %v742 = vpack.c.b16 %v611, %v610
    %v743 = vpack.c.b16 %v613, %v612
    %v744 = vpack.c.b16 %v615, %v614
    %v745 = vpack.c.b16 %v617, %v616
    %v746 = vpack.c.b16 %v619, %v618
    %v747 = vpack.c.b16 %v621, %v620
    %v748 = vpack.c.b16 %v623, %v622
    %v749 = vpack.c.b16 %v625, %v624
    %v750 = vpack.c.b16 %v627, %v626
    %v751 = vpack.c.b16 %v629, %v628
    %v752 = vpack.c.b16 %v631, %v630
    %v753 = vpack.c.b16 %v633, %v632
    %v754 = vpack.c.b16 %v635, %v634
    %v755 = vpack.c.b16 %v637, %v636
    %v756 = vpack.c.b16 %v639, %v638
    %v757 = vpack.c.b16 %v641, %v640
    %v758 = vpack.c.b16 %v643, %v642
    %v759 = vpack.c.b16 %v645, %v644
    %v760 = vpack.c.b16 %v647, %v646
    %v761 = vpack.c.b16 %v649, %v648
    %v762 = vpack.c.b16 %v651, %v650
    %v763 = vpack.c.b16 %v653, %v652
    %v764 = vpack.c.b16 %v655, %v654
    %v765 = vpack.c.b16 %v657, %v656
    %v766 = vpack.c.b16 %v659, %v658
    %v767 = vpack.c.b16 %v661, %v660
    %v768 = vpack.c.b16 %v663, %v662
    %v769 = vpack.c.b16 %v665, %v664
    %v770 = vpack.c.b16 %v667, %v666
    %v771 = vpack.c.b16 %v669, %v668
    %v772 = vpack.c.b16 %v671, %v670
    %v773 = vpack.c.b16 %v673, %v672
    %v774 = vpack.c.b16 %v675, %v674
    %v775 = vpack.c.b16 %v677, %v676
    %v776 = vpack.c.b16 %v679, %v678
    %v777 = vpack.c.b16 %v681, %v680
    %874 = vmatprep.subr.bf16.mxu0 0
    %875 = vmatpush1.bf16.msra.mxu0 %v689
    %876 = vmatprep.subr.bf16.mxu0 0
    %877 = vmatpush1.bf16.msra.mxu0 %v688
    %878 = vmatprep.subr.bf16.mxu0 0
    %879 = vmatpush1.bf16.msra.mxu0 %v687
    %880 = vmatprep.subr.bf16.mxu0 0
    %881 = vmatpush1.bf16.msra.mxu0 %v686
    %882 = vmatprep.subr.bf16.mxu0 0
    %883 = vmatpush1.bf16.msra.mxu0 %v685
    %884 = vmatprep.subr.bf16.mxu0 0
    %885 = vmatpush1.bf16.msra.mxu0 %v684
    %886 = vmatprep.subr.bf16.mxu0 0
    %887 = vmatpush1.bf16.msra.mxu0 %v683
    %888 = vmatprep.subr.bf16.mxu0 0
    %889 = vmatpush1.bf16.msra.mxu0 %v682
    %890 = vmatprep.subr.bf16.mxu0 0
    %891 = vmatpush2.bf16.msra.mxu0 %v697
    %892 = vmatprep.subr.bf16.mxu0 0
    %893 = vmatpush2.bf16.msra.mxu0 %v696
    %894 = vmatprep.subr.bf16.mxu0 0
    %895 = vmatpush2.bf16.msra.mxu0 %v695
    %896 = vmatprep.subr.bf16.mxu0 0
    %897 = vmatpush2.bf16.msra.mxu0 %v694
    %898 = vmatprep.subr.bf16.mxu0 0
    %899 = vmatpush2.bf16.msra.mxu0 %v693
    %900 = vmatprep.subr.bf16.mxu0 0
    %901 = vmatpush2.bf16.msra.mxu0 %v692
    %902 = vmatprep.subr.bf16.mxu0 0
    %903 = vmatpush2.bf16.msra.mxu0 %v691
    %904 = vmatprep.subr.bf16.mxu0 0
    %905 = vmatpush2.bf16.msra.mxu0 %v690
    %906 = vmatprep.mubr.bf16.mxu0 %v90
    %907 = vmatmul.mubr.bf16.gmra.mxu0 %v89
    %v908 = vpop.f32.mrf.mxu0
    %v909 = vadd.f32 %v297, %v908
    %v910 = vpop.f32.mrf.mxu0
    %v911 = vpop.f32.mrf.mxu0
    %v912 = vpop.f32.mrf.mxu0
    %913 = vdwg.mxu0
    %914 = vmatprep.subr.bf16.mxu0 0
    %915 = vmatpush1.bf16.msra.mxu0 %v705
    %916 = vmatprep.subr.bf16.mxu0 0
    %917 = vmatpush1.bf16.msra.mxu0 %v704
    %918 = vmatprep.subr.bf16.mxu0 0
    %919 = vmatpush1.bf16.msra.mxu0 %v703
    %920 = vmatprep.subr.bf16.mxu0 0
    %921 = vmatpush1.bf16.msra.mxu0 %v702
    %922 = vmatprep.subr.bf16.mxu0 0
    %923 = vmatpush1.bf16.msra.mxu0 %v701
    %924 = vmatprep.subr.bf16.mxu0 0
    %925 = vmatpush1.bf16.msra.mxu0 %v700
    %926 = vmatprep.subr.bf16.mxu0 0
    %927 = vmatpush1.bf16.msra.mxu0 %v699
    %928 = vmatprep.subr.bf16.mxu0 0
    %929 = vmatpush1.bf16.msra.mxu0 %v698
    %930 = vmatprep.subr.bf16.mxu0 0
    %931 = vmatpush2.bf16.msra.mxu0 %v713
    %932 = vmatprep.subr.bf16.mxu0 0
    %933 = vmatpush2.bf16.msra.mxu0 %v712
    %934 = vmatprep.subr.bf16.mxu0 0
    %935 = vmatpush2.bf16.msra.mxu0 %v711
    %936 = vmatprep.subr.bf16.mxu0 0
    %937 = vmatpush2.bf16.msra.mxu0 %v710
    %938 = vmatprep.subr.bf16.mxu0 0
    %939 = vmatpush2.bf16.msra.mxu0 %v709
    %940 = vmatprep.subr.bf16.mxu0 0
    %941 = vmatpush2.bf16.msra.mxu0 %v708
    %942 = vmatprep.subr.bf16.mxu0 0
    %943 = vmatpush2.bf16.msra.mxu0 %v707
    %944 = vmatprep.subr.bf16.mxu0 0
    %945 = vmatpush2.bf16.msra.mxu0 %v706
    %946 = vmatprep.mubr.bf16.mxu0 %v92
    %947 = vmatmul.mubr.bf16.gmra.mxu0 %v91
    %v948 = vpop.f32.mrf.mxu0
    %v949 = vadd.f32 %v909, %v948
    %v950 = vpop.f32.mrf.mxu0
    %v951 = vpop.f32.mrf.mxu0
    %v952 = vpop.f32.mrf.mxu0
    %953 = vdwg.mxu0
    %954 = vmatprep.subr.bf16.mxu0 0
    %955 = vmatpush1.bf16.msra.mxu0 %v721
    %956 = vmatprep.subr.bf16.mxu0 0
    %957 = vmatpush1.bf16.msra.mxu0 %v720
    %958 = vmatprep.subr.bf16.mxu0 0
    %959 = vmatpush1.bf16.msra.mxu0 %v719
    %960 = vmatprep.subr.bf16.mxu0 0
    %961 = vmatpush1.bf16.msra.mxu0 %v718
    %962 = vmatprep.subr.bf16.mxu0 0
    %963 = vmatpush1.bf16.msra.mxu0 %v717
    %964 = vmatprep.subr.bf16.mxu0 0
    %965 = vmatpush1.bf16.msra.mxu0 %v716
    %966 = vmatprep.subr.bf16.mxu0 0
    %967 = vmatpush1.bf16.msra.mxu0 %v715
    %968 = vmatprep.subr.bf16.mxu0 0
    %969 = vmatpush1.bf16.msra.mxu0 %v714
    %970 = vmatprep.subr.bf16.mxu0 0
    %971 = vmatpush2.bf16.msra.mxu0 %v729
    %972 = vmatprep.subr.bf16.mxu0 0
    %973 = vmatpush2.bf16.msra.mxu0 %v728
    %974 = vmatprep.subr.bf16.mxu0 0
    %975 = vmatpush2.bf16.msra.mxu0 %v727
    %976 = vmatprep.subr.bf16.mxu0 0
    %977 = vmatpush2.bf16.msra.mxu0 %v726
    %978 = vmatprep.subr.bf16.mxu0 0
    %979 = vmatpush2.bf16.msra.mxu0 %v725
    %980 = vmatprep.subr.bf16.mxu0 0
    %981 = vmatpush2.bf16.msra.mxu0 %v724
    %982 = vmatprep.subr.bf16.mxu0 0
    %983 = vmatpush2.bf16.msra.mxu0 %v723
    %984 = vmatprep.subr.bf16.mxu0 0
    %985 = vmatpush2.bf16.msra.mxu0 %v722
    %986 = vmatprep.mubr.bf16.mxu0 %v94
    %987 = vmatmul.mubr.bf16.gmra.mxu0 %v93
    %v988 = vpop.f32.mrf.mxu0
    %v989 = vadd.f32 %v949, %v988
    %v990 = vpop.f32.mrf.mxu0
    %v991 = vpop.f32.mrf.mxu0
    %v992 = vpop.f32.mrf.mxu0
    %993 = vdwg.mxu0
    %994 = vmatprep.subr.bf16.mxu0 0
    %995 = vmatpush1.bf16.msra.mxu0 %v737
    %996 = vmatprep.subr.bf16.mxu0 0
    %997 = vmatpush1.bf16.msra.mxu0 %v736
    %998 = vmatprep.subr.bf16.mxu0 0
    %999 = vmatpush1.bf16.msra.mxu0 %v735
    %1000 = vmatprep.subr.bf16.mxu0 0
    %1001 = vmatpush1.bf16.msra.mxu0 %v734
    %1002 = vmatprep.subr.bf16.mxu0 0
    %1003 = vmatpush1.bf16.msra.mxu0 %v733
    %1004 = vmatprep.subr.bf16.mxu0 0
    %1005 = vmatpush1.bf16.msra.mxu0 %v732
    %1006 = vmatprep.subr.bf16.mxu0 0
    %1007 = vmatpush1.bf16.msra.mxu0 %v731
    %1008 = vmatprep.subr.bf16.mxu0 0
    %1009 = vmatpush1.bf16.msra.mxu0 %v730
    %1010 = vmatprep.subr.bf16.mxu0 0
    %1011 = vmatpush2.bf16.msra.mxu0 %v745
    %1012 = vmatprep.subr.bf16.mxu0 0
    %1013 = vmatpush2.bf16.msra.mxu0 %v744
    %1014 = vmatprep.subr.bf16.mxu0 0
    %1015 = vmatpush2.bf16.msra.mxu0 %v743
    %1016 = vmatprep.subr.bf16.mxu0 0
    %1017 = vmatpush2.bf16.msra.mxu0 %v742
    %1018 = vmatprep.subr.bf16.mxu0 0
    %1019 = vmatpush2.bf16.msra.mxu0 %v741
    %1020 = vmatprep.subr.bf16.mxu0 0
    %1021 = vmatpush2.bf16.msra.mxu0 %v740
    %1022 = vmatprep.subr.bf16.mxu0 0
    %1023 = vmatpush2.bf16.msra.mxu0 %v739
    %1024 = vmatprep.subr.bf16.mxu0 0
    %1025 = vmatpush2.bf16.msra.mxu0 %v738
    %1026 = vmatprep.mubr.bf16.mxu0 %v96
    %1027 = vmatmul.mubr.bf16.gmra.mxu0 %v95
    %v1028 = vpop.f32.mrf.mxu0
    %v1029 = vadd.f32 %v989, %v1028
    %v1030 = vpop.f32.mrf.mxu0
    %v1031 = vpop.f32.mrf.mxu0
    %v1032 = vpop.f32.mrf.mxu0
    %1033 = vdwg.mxu0
    %1034 = vmatprep.subr.bf16.mxu0 0
    %1035 = vmatpush1.bf16.msra.mxu0 %v753
    %1036 = vmatprep.subr.bf16.mxu0 0
    %1037 = vmatpush1.bf16.msra.mxu0 %v752
    %1038 = vmatprep.subr.bf16.mxu0 0
    %1039 = vmatpush1.bf16.msra.mxu0 %v751
    %1040 = vmatprep.subr.bf16.mxu0 0
    %1041 = vmatpush1.bf16.msra.mxu0 %v750
    %1042 = vmatprep.subr.bf16.mxu0 0
    %1043 = vmatpush1.bf16.msra.mxu0 %v749
    %1044 = vmatprep.subr.bf16.mxu0 0
    %1045 = vmatpush1.bf16.msra.mxu0 %v748
    %1046 = vmatprep.subr.bf16.mxu0 0
    %1047 = vmatpush1.bf16.msra.mxu0 %v747
    %1048 = vmatprep.subr.bf16.mxu0 0
    %1049 = vmatpush1.bf16.msra.mxu0 %v746
    %1050 = vmatprep.subr.bf16.mxu0 0
    %1051 = vmatpush2.bf16.msra.mxu0 %v761
    %1052 = vmatprep.subr.bf16.mxu0 0
    %1053 = vmatpush2.bf16.msra.mxu0 %v760
    %1054 = vmatprep.subr.bf16.mxu0 0
    %1055 = vmatpush2.bf16.msra.mxu0 %v759
    %1056 = vmatprep.subr.bf16.mxu0 0
    %1057 = vmatpush2.bf16.msra.mxu0 %v758
    %1058 = vmatprep.subr.bf16.mxu0 0
    %1059 = vmatpush2.bf16.msra.mxu0 %v757
    %1060 = vmatprep.subr.bf16.mxu0 0
    %1061 = vmatpush2.bf16.msra.mxu0 %v756
    %1062 = vmatprep.subr.bf16.mxu0 0
    %1063 = vmatpush2.bf16.msra.mxu0 %v755
    %1064 = vmatprep.subr.bf16.mxu0 0
    %1065 = vmatpush2.bf16.msra.mxu0 %v754
    %1066 = vmatprep.mubr.bf16.mxu0 %v98
    %1067 = vmatmul.mubr.bf16.gmra.mxu0 %v97
    %v1068 = vpop.f32.mrf.mxu0
    %v1069 = vadd.f32 %v1029, %v1068
    %v1070 = vpop.f32.mrf.mxu0
    %v1071 = vpop.f32.mrf.mxu0
    %v1072 = vpop.f32.mrf.mxu0
    %1073 = vdwg.mxu0
    %1074 = vmatprep.subr.bf16.mxu0 0
    %1075 = vmatpush1.bf16.msra.mxu0 %v769
    %1076 = vmatprep.subr.bf16.mxu0 0
    %1077 = vmatpush1.bf16.msra.mxu0 %v768
    %1078 = vmatprep.subr.bf16.mxu0 0
    %1079 = vmatpush1.bf16.msra.mxu0 %v767
    %1080 = vmatprep.subr.bf16.mxu0 0
    %1081 = vmatpush1.bf16.msra.mxu0 %v766
    %1082 = vmatprep.subr.bf16.mxu0 0
    %1083 = vmatpush1.bf16.msra.mxu0 %v765
    %1084 = vmatprep.subr.bf16.mxu0 0
    %1085 = vmatpush1.bf16.msra.mxu0 %v764
    %1086 = vmatprep.subr.bf16.mxu0 0
    %1087 = vmatpush1.bf16.msra.mxu0 %v763
    %1088 = vmatprep.subr.bf16.mxu0 0
    %1089 = vmatpush1.bf16.msra.mxu0 %v762
    %1090 = vmatprep.subr.bf16.mxu0 0
    %1091 = vmatpush2.bf16.msra.mxu0 %v777
    %1092 = vmatprep.subr.bf16.mxu0 0
    %1093 = vmatpush2.bf16.msra.mxu0 %v776
    %1094 = vmatprep.subr.bf16.mxu0 0
    %1095 = vmatpush2.bf16.msra.mxu0 %v775
    %1096 = vmatprep.subr.bf16.mxu0 0
    %1097 = vmatpush2.bf16.msra.mxu0 %v774
    %1098 = vmatprep.subr.bf16.mxu0 0
    %1099 = vmatpush2.bf16.msra.mxu0 %v773
    %1100 = vmatprep.subr.bf16.mxu0 0
    %1101 = vmatpush2.bf16.msra.mxu0 %v772
    %1102 = vmatprep.subr.bf16.mxu0 0
    %1103 = vmatpush2.bf16.msra.mxu0 %v771
    %1104 = vmatprep.subr.bf16.mxu0 0
    %1105 = vmatpush2.bf16.msra.mxu0 %v770
    %1106 = vmatprep.mubr.bf16.mxu0 %v100
    %1107 = vmatmul.mubr.bf16.gmra.mxu0 %v99
    %v1108 = vpop.f32.mrf.mxu0
    %v1109 = vadd.f32 %v1069, %v1108
    %v1110 = vpop.f32.mrf.mxu0
    %v1111 = vpop.f32.mrf.mxu0
    %v1112 = vpop.f32.mrf.mxu0
    %1113 = vdwg.mxu0
    %v1114 = vmax.f32 %v1109, 0.0
    %v1115 = vpack.c.bf16 %v1114, %v1114
    %v1116 = vld [vmem:[%s1 + $0x300] sm:$0xf]
    %v1117 = vld [vmem:[%s1 + $0x304] sm:$0xf]
    %v1118 = vld [vmem:[%s1 + $0x308] sm:$0xf]
    %v1119 = vld [vmem:[%s1 + $0x30c] sm:$0xf]
    %v1120 = vld [vmem:[%s1 + $0x310] sm:$0xf]
    %v1121 = vld [vmem:[%s1 + $0x314] sm:$0xf]
    %v1122 = vld [vmem:[%s1 + $0x318] sm:$0xf]
    %v1123 = vld [vmem:[%s1 + $0x31c] sm:$0xf]
    %v1124 = vld [vmem:[%s1 + $0x320] sm:$0xf]
    %v1125 = vld [vmem:[%s1 + $0x324] sm:$0xf]
    %v1126 = vld [vmem:[%s1 + $0x328] sm:$0xf]
    %v1127 = vld [vmem:[%s1 + $0x32c] sm:$0xf]
    %v1128 = vld [vmem:[%s1 + $0x330] sm:$0xf]
    %v1129 = vld [vmem:[%s1 + $0x334] sm:$0xf]
    %v1130 = vld [vmem:[%s1 + $0x338] sm:$0xf]
    %v1131 = vld [vmem:[%s1 + $0x33c] sm:$0xf]
    %v1132 = vld [vmem:[%s2 + $0x1] sm:$0x1]
    %v1133 = vlaneseq
    %v1134 = vshrl.u32 %v1133, 7
    %v1135 = vsub.s32 0, %v1134
    %v1136 = vrot.slane %v1132, %v1135
    %v1153 = vunpack.c.l.b16 %v1116
    %v1154 = vunpack.c.l.b16 %v1117
    %v1155 = vunpack.c.l.b16 %v1118
    %v1156 = vunpack.c.l.b16 %v1119
    %v1157 = vunpack.c.l.b16 %v1120
    %v1158 = vunpack.c.l.b16 %v1121
    %v1159 = vunpack.c.l.b16 %v1122
    %v1160 = vunpack.c.l.b16 %v1123
    %v1161 = vunpack.c.l.b16 %v1124
    %v1162 = vunpack.c.l.b16 %v1125
    %v1163 = vunpack.c.l.b16 %v1126
    %v1164 = vunpack.c.l.b16 %v1127
    %v1165 = vunpack.c.l.b16 %v1128
    %v1166 = vunpack.c.l.b16 %v1129
    %v1167 = vunpack.c.l.b16 %v1130
    %v1168 = vunpack.c.l.b16 %v1131
    %v1169 = vpack.c.b16 %v1154, %v1153
    %v1170 = vpack.c.b16 %v1156, %v1155
    %v1171 = vpack.c.b16 %v1158, %v1157
    %v1172 = vpack.c.b16 %v1160, %v1159
    %v1173 = vpack.c.b16 %v1162, %v1161
    %v1174 = vpack.c.b16 %v1164, %v1163
    %v1175 = vpack.c.b16 %v1166, %v1165
    %v1176 = vpack.c.b16 %v1168, %v1167
    %1185 = vmatprep.subr.bf16.mxu0 0
    %1186 = vmatpush1.bf16.msra.mxu0 %v1176
    %1187 = vmatprep.subr.bf16.mxu0 0
    %1188 = vmatpush1.bf16.msra.mxu0 %v1175
    %1189 = vmatprep.subr.bf16.mxu0 0
    %1190 = vmatpush1.bf16.msra.mxu0 %v1174
    %1191 = vmatprep.subr.bf16.mxu0 0
    %1192 = vmatpush1.bf16.msra.mxu0 %v1173
    %1193 = vmatprep.subr.bf16.mxu0 0
    %1194 = vmatpush1.bf16.msra.mxu0 %v1172
    %1195 = vmatprep.subr.bf16.mxu0 0
    %1196 = vmatpush1.bf16.msra.mxu0 %v1171
    %1197 = vmatprep.subr.bf16.mxu0 0
    %1198 = vmatpush1.bf16.msra.mxu0 %v1170
    %1199 = vmatprep.subr.bf16.mxu0 0
    %1200 = vmatpush1.bf16.msra.mxu0 %v1169
    %1201 = vmatprep.subr.bf16.mxu0 0
    %1202 = vmatpush2.bf16.msra.mxu0 0
    %1203 = vmatprep.subr.bf16.mxu0 0
    %1204 = vmatpush2.bf16.msra.mxu0 0
    %1205 = vmatprep.subr.bf16.mxu0 0
    %1206 = vmatpush2.bf16.msra.mxu0 0
    %1207 = vmatprep.subr.bf16.mxu0 0
    %1208 = vmatpush2.bf16.msra.mxu0 0
    %1209 = vmatprep.subr.bf16.mxu0 0
    %1210 = vmatpush2.bf16.msra.mxu0 0
    %1211 = vmatprep.subr.bf16.mxu0 0
    %1212 = vmatpush2.bf16.msra.mxu0 0
    %1213 = vmatprep.subr.bf16.mxu0 0
    %1214 = vmatpush2.bf16.msra.mxu0 0
    %1215 = vmatprep.subr.bf16.mxu0 0
    %1216 = vmatpush2.bf16.msra.mxu0 0
    %1217 = vmatprep.mubr.bf16.mxu0 0
    %1218 = vmatmul.mubr.bf16.gmra.mxu0 %v1115
    %v1219 = vpop.f32.mrf.mxu0
    %v1220 = vadd.f32 %v1136, %v1219
    %v1221 = vpop.f32.mrf.mxu0
    %v1222 = vpop.f32.mrf.mxu0
    %v1223 = vpop.f32.mrf.mxu0
    %1224 = vdwg.mxu0
    %v1225 = vmax.f32 %v1220, 0.0
    %v1226 = vpack.c.bf16 %v1225, %v1225
    %vm1227 = vcmask 516096
    %1228 = vst.msk [vmem:[#allocation2] sm:$0x1] %vm1227, %v1226
    %v1231 = vunpack.c.l.s4 1966171168
    %v1232 = vunpack.c.0.s8 %v1231
    %v1233 = vlaneseq
    %v1234 = vshrl.u32 %v1233, 7
    %v1235 = vsub.s32 %v1232, %v1234
    %v1236 = vrot.slane %v1226, %v1235
    %v1237 = vcombine.high %v1236, %v1236
    %v1239 = vunpack.c.l.s4 1966171168
    %v1240 = vunpack.c.0.s8 %v1239
    %v1241 = vlaneseq
    %v1242 = vshrl.u32 %v1241, 7
    %v1243 = vsub.s32 %v1240, %v1242
    %v1244 = vrot.slane %v1236, %v1243
    %v1246 = vunpack.c.l.s4 1966171168
    %v1247 = vunpack.c.0.s8 %v1246
    %v1248 = vlaneseq
    %v1249 = vshrl.u32 %v1248, 7
    %v1250 = vsub.s32 %v1247, %v1249
    %v1251 = vrot.slane %v1237, %v1250
    %1252 = vrot.lane.b32.xlu0 %v1251, 64
    %v1253 = vpop.permute.xlu0 %1252
    %vm1255 = vcmask 1040896
    %1256 = vst.msk [vmem:[#allocation2] sm:$0x1] %vm1255, %v1253
    %v1257 = vcombine.high %v1244, %v1244
    %1259 = vst.msk [vmem:[#allocation2 + $0x1] sm:$0x1] %vm1227, %v1257
    %v1260 = vcombine.high %v1251, %v1251
    %1261 = vrot.lane.b32.xlu0 %v1260, 64
    %v1262 = vpop.permute.xlu0 %1261
    %1264 = vst.msk [vmem:[#allocation2 + $0x1] sm:$0x1] %vm1255, %v1262
    %v1265 = vld [vmem:[#allocation2] sm:$0x3]
    %v1266 = vld [vmem:[%s1 + $0x340] sm:$0xf]
    %v1267 = vld [vmem:[%s1 + $0x344] sm:$0xf]
    %v1268 = vld [vmem:[%s1 + $0x348] sm:$0xf]
    %v1269 = vld [vmem:[%s1 + $0x34c] sm:$0xf]
    %v1270 = vld [vmem:[%s1 + $0x350] sm:$0xf]
    %v1271 = vld [vmem:[%s1 + $0x354] sm:$0xf]
    %v1272 = vld [vmem:[%s1 + $0x358] sm:$0xf]
    %v1273 = vld [vmem:[%s1 + $0x35c] sm:$0xf]
    %v1274 = vld [vmem:[%s1 + $0x360] sm:$0xf]
    %v1275 = vld [vmem:[%s1 + $0x364] sm:$0xf]
    %v1276 = vld [vmem:[%s1 + $0x368] sm:$0xf]
    %v1277 = vld [vmem:[%s1 + $0x36c] sm:$0xf]
    %v1278 = vld [vmem:[%s1 + $0x370] sm:$0xf]
    %v1279 = vld [vmem:[%s1 + $0x374] sm:$0xf]
    %v1280 = vld [vmem:[%s1 + $0x378] sm:$0xf]
    %v1281 = vld [vmem:[%s1 + $0x37c] sm:$0xf]
    %v1282 = vld [vmem:[%s1 + $0x380] sm:$0xf]
    %v1283 = vld [vmem:[%s1 + $0x384] sm:$0xf]
    %v1284 = vld [vmem:[%s1 + $0x388] sm:$0xf]
    %v1285 = vld [vmem:[%s1 + $0x38c] sm:$0xf]
    %v1286 = vld [vmem:[%s1 + $0x390] sm:$0xf]
    %v1287 = vld [vmem:[%s1 + $0x394] sm:$0xf]
    %v1288 = vld [vmem:[%s1 + $0x398] sm:$0xf]
    %v1289 = vld [vmem:[%s1 + $0x39c] sm:$0xf]
    %v1290 = vld [vmem:[%s1 + $0x3a0] sm:$0xf]
    %v1291 = vld [vmem:[%s1 + $0x3a4] sm:$0xf]
    %v1292 = vld [vmem:[%s1 + $0x3a8] sm:$0xf]
    %v1293 = vld [vmem:[%s1 + $0x3ac] sm:$0xf]
    %v1294 = vld [vmem:[%s1 + $0x3b0] sm:$0xf]
    %v1295 = vld [vmem:[%s1 + $0x3b4] sm:$0xf]
    %v1296 = vld [vmem:[%s1 + $0x3b8] sm:$0xf]
    %v1297 = vld [vmem:[%s1 + $0x3bc] sm:$0xf]
    %v1298 = vld [vmem:[%s2 + $0x2] sm:$0x1]
    %v1299 = vlaneseq
    %v1300 = vshrl.u32 %v1299, 7
    %v1301 = vsub.s32 0, %v1300
    %v1302 = vrot.slane %v1298, %v1301
    %v1305 = vunpack.c.l.s4 1966171168
    %v1306 = vunpack.c.0.s8 %v1305
    %v1307 = vlaneseq
    %v1308 = vshrl.u32 %v1307, 7
    %v1309 = vsub.s32 %v1306, %v1308
    %v1310 = vrot.slane %v1265, %v1309
    %v1311 = vcombine.high %v1310, %v1310
    %v1313 = vunpack.c.l.s4 1966171168
    %v1314 = vunpack.c.0.s8 %v1313
    %v1315 = vlaneseq
    %v1316 = vshrl.u32 %v1315, 7
    %v1317 = vsub.s32 %v1314, %v1316
    %v1318 = vrot.slane %v1310, %v1317
    %v1320 = vunpack.c.l.s4 1966171168
    %v1321 = vunpack.c.0.s8 %v1320
    %v1322 = vlaneseq
    %v1323 = vshrl.u32 %v1322, 7
    %v1324 = vsub.s32 %v1321, %v1323
    %v1325 = vrot.slane %v1311, %v1324
    %v1360 = vunpack.c.l.b16 %v1266
    %v1361 = vunpack.c.l.b16 %v1267
    %v1362 = vunpack.c.l.b16 %v1268
    %v1363 = vunpack.c.l.b16 %v1269
    %v1364 = vunpack.c.l.b16 %v1270
    %v1365 = vunpack.c.l.b16 %v1271
    %v1366 = vunpack.c.l.b16 %v1272
    %v1367 = vunpack.c.l.b16 %v1273
    %v1368 = vunpack.c.l.b16 %v1274
    %v1369 = vunpack.c.l.b16 %v1275
    %v1370 = vunpack.c.l.b16 %v1276
    %v1371 = vunpack.c.l.b16 %v1277
    %v1372 = vunpack.c.l.b16 %v1278
    %v1373 = vunpack.c.l.b16 %v1279
    %v1374 = vunpack.c.l.b16 %v1280
    %v1375 = vunpack.c.l.b16 %v1281
    %v1376 = vunpack.c.l.b16 %v1282
    %v1377 = vunpack.c.l.b16 %v1283
    %v1378 = vunpack.c.l.b16 %v1284
    %v1379 = vunpack.c.l.b16 %v1285
    %v1380 = vunpack.c.l.b16 %v1286
    %v1381 = vunpack.c.l.b16 %v1287
    %v1382 = vunpack.c.l.b16 %v1288
    %v1383 = vunpack.c.l.b16 %v1289
    %v1384 = vunpack.c.l.b16 %v1290
    %v1385 = vunpack.c.l.b16 %v1291
    %v1386 = vunpack.c.l.b16 %v1292
    %v1387 = vunpack.c.l.b16 %v1293
    %v1388 = vunpack.c.l.b16 %v1294
    %v1389 = vunpack.c.l.b16 %v1295
    %v1390 = vunpack.c.l.b16 %v1296
    %v1391 = vunpack.c.l.b16 %v1297
    %v1392 = vpack.c.b16 %v1361, %v1360
    %v1393 = vpack.c.b16 %v1363, %v1362
    %v1394 = vpack.c.b16 %v1365, %v1364
    %v1395 = vpack.c.b16 %v1367, %v1366
    %v1396 = vpack.c.b16 %v1369, %v1368
    %v1397 = vpack.c.b16 %v1371, %v1370
    %v1398 = vpack.c.b16 %v1373, %v1372
    %v1399 = vpack.c.b16 %v1375, %v1374
    %v1400 = vpack.c.b16 %v1377, %v1376
    %v1401 = vpack.c.b16 %v1379, %v1378
    %v1402 = vpack.c.b16 %v1381, %v1380
    %v1403 = vpack.c.b16 %v1383, %v1382
    %v1404 = vpack.c.b16 %v1385, %v1384
    %v1405 = vpack.c.b16 %v1387, %v1386
    %v1406 = vpack.c.b16 %v1389, %v1388
    %v1407 = vpack.c.b16 %v1391, %v1390
    %1424 = vmatprep.subr.bf16.mxu0 0
    %1425 = vmatpush1.bf16.msra.mxu0 %v1399
    %1426 = vmatprep.subr.bf16.mxu0 0
    %1427 = vmatpush1.bf16.msra.mxu0 %v1398
    %1428 = vmatprep.subr.bf16.mxu0 0
    %1429 = vmatpush1.bf16.msra.mxu0 %v1397
    %1430 = vmatprep.subr.bf16.mxu0 0
    %1431 = vmatpush1.bf16.msra.mxu0 %v1396
    %1432 = vmatprep.subr.bf16.mxu0 0
    %1433 = vmatpush1.bf16.msra.mxu0 %v1395
    %1434 = vmatprep.subr.bf16.mxu0 0
    %1435 = vmatpush1.bf16.msra.mxu0 %v1394
    %1436 = vmatprep.subr.bf16.mxu0 0
    %1437 = vmatpush1.bf16.msra.mxu0 %v1393
    %1438 = vmatprep.subr.bf16.mxu0 0
    %1439 = vmatpush1.bf16.msra.mxu0 %v1392
    %1440 = vmatprep.subr.bf16.mxu0 0
    %1441 = vmatpush2.bf16.msra.mxu0 %v1407
    %1442 = vmatprep.subr.bf16.mxu0 0
    %1443 = vmatpush2.bf16.msra.mxu0 %v1406
    %1444 = vmatprep.subr.bf16.mxu0 0
    %1445 = vmatpush2.bf16.msra.mxu0 %v1405
    %1446 = vmatprep.subr.bf16.mxu0 0
    %1447 = vmatpush2.bf16.msra.mxu0 %v1404
    %1448 = vmatprep.subr.bf16.mxu0 0
    %1449 = vmatpush2.bf16.msra.mxu0 %v1403
    %1450 = vmatprep.subr.bf16.mxu0 0
    %1451 = vmatpush2.bf16.msra.mxu0 %v1402
    %1452 = vmatprep.subr.bf16.mxu0 0
    %1453 = vmatpush2.bf16.msra.mxu0 %v1401
    %1454 = vmatprep.subr.bf16.mxu0 0
    %1455 = vmatpush2.bf16.msra.mxu0 %v1400
    %1456 = vmatprep.mubr.bf16.mxu0 %v1325
    %1457 = vmatmul.mubr.bf16.gmra.mxu0 %v1318
    %v1458 = vpop.f32.mrf.mxu0
    %v1459 = vadd.f32 %v1302, %v1458
    %v1460 = vpop.f32.mrf.mxu0
    %v1461 = vpop.f32.mrf.mxu0
    %v1462 = vpop.f32.mrf.mxu0
    %1463 = vdwg.mxu0
    %v1464 = vmax.f32 %v1459, 0.0
    %v1465 = vpack.c.bf16 %v1464, %v1464
    %v1466 = vld [vmem:[%s1 + $0x3c0] sm:$0xf]
    %v1467 = vld [vmem:[%s1 + $0x3c4] sm:$0xf]
    %v1468 = vld [vmem:[%s1 + $0x3c8] sm:$0xf]
    %v1469 = vld [vmem:[%s1 + $0x3cc] sm:$0xf]
    %v1470 = vld [vmem:[%s1 + $0x3d0] sm:$0xf]
    %v1471 = vld [vmem:[%s1 + $0x3d4] sm:$0xf]
    %v1472 = vld [vmem:[%s1 + $0x3d8] sm:$0xf]
    %v1473 = vld [vmem:[%s1 + $0x3dc] sm:$0xf]
    %v1474 = vld [vmem:[%s1 + $0x3e0] sm:$0xf]
    %v1475 = vld [vmem:[%s1 + $0x3e4] sm:$0xf]
    %v1476 = vld [vmem:[%s1 + $0x3e8] sm:$0xf]
    %v1477 = vld [vmem:[%s1 + $0x3ec] sm:$0xf]
    %v1478 = vld [vmem:[%s1 + $0x3f0] sm:$0xf]
    %v1479 = vld [vmem:[%s1 + $0x3f4] sm:$0xf]
    %v1480 = vld [vmem:[%s1 + $0x3f8] sm:$0xf]
    %v1481 = vld [vmem:[%s1 + $0x3fc] sm:$0xf]
    %v1482 = vld [vmem:[%s2 + $0x3] sm:$0x1]
    %v1483 = vlaneseq
    %v1484 = vshrl.u32 %v1483, 7
    %v1485 = vsub.s32 0, %v1484
    %v1486 = vrot.slane %v1482, %v1485
    %v1503 = vunpack.c.l.b16 %v1466
    %v1504 = vunpack.c.l.b16 %v1467
    %v1505 = vunpack.c.l.b16 %v1468
    %v1506 = vunpack.c.l.b16 %v1469
    %v1507 = vunpack.c.l.b16 %v1470
    %v1508 = vunpack.c.l.b16 %v1471
    %v1509 = vunpack.c.l.b16 %v1472
    %v1510 = vunpack.c.l.b16 %v1473
    %v1511 = vunpack.c.l.b16 %v1474
    %v1512 = vunpack.c.l.b16 %v1475
    %v1513 = vunpack.c.l.b16 %v1476
    %v1514 = vunpack.c.l.b16 %v1477
    %v1515 = vunpack.c.l.b16 %v1478
    %v1516 = vunpack.c.l.b16 %v1479
    %v1517 = vunpack.c.l.b16 %v1480
    %v1518 = vunpack.c.l.b16 %v1481
    %v1519 = vpack.c.b16 %v1504, %v1503
    %v1520 = vpack.c.b16 %v1506, %v1505
    %v1521 = vpack.c.b16 %v1508, %v1507
    %v1522 = vpack.c.b16 %v1510, %v1509
    %v1523 = vpack.c.b16 %v1512, %v1511
    %v1524 = vpack.c.b16 %v1514, %v1513
    %v1525 = vpack.c.b16 %v1516, %v1515
    %v1526 = vpack.c.b16 %v1518, %v1517
    %1535 = vmatprep.subr.bf16.mxu0 0
    %1536 = vmatpush1.bf16.msra.mxu0 %v1526
    %1537 = vmatprep.subr.bf16.mxu0 0
    %1538 = vmatpush1.bf16.msra.mxu0 %v1525
    %1539 = vmatprep.subr.bf16.mxu0 0
    %1540 = vmatpush1.bf16.msra.mxu0 %v1524
    %1541 = vmatprep.subr.bf16.mxu0 0
    %1542 = vmatpush1.bf16.msra.mxu0 %v1523
    %1543 = vmatprep.subr.bf16.mxu0 0
    %1544 = vmatpush1.bf16.msra.mxu0 %v1522
    %1545 = vmatprep.subr.bf16.mxu0 0
    %1546 = vmatpush1.bf16.msra.mxu0 %v1521
    %1547 = vmatprep.subr.bf16.mxu0 0
    %1548 = vmatpush1.bf16.msra.mxu0 %v1520
    %1549 = vmatprep.subr.bf16.mxu0 0
    %1550 = vmatpush1.bf16.msra.mxu0 %v1519
    %1551 = vmatprep.subr.bf16.mxu0 0
    %1552 = vmatpush2.bf16.msra.mxu0 0
    %1553 = vmatprep.subr.bf16.mxu0 0
    %1554 = vmatpush2.bf16.msra.mxu0 0
    %1555 = vmatprep.subr.bf16.mxu0 0
    %1556 = vmatpush2.bf16.msra.mxu0 0
    %1557 = vmatprep.subr.bf16.mxu0 0
    %1558 = vmatpush2.bf16.msra.mxu0 0
    %1559 = vmatprep.subr.bf16.mxu0 0
    %1560 = vmatpush2.bf16.msra.mxu0 0
    %1561 = vmatprep.subr.bf16.mxu0 0
    %1562 = vmatpush2.bf16.msra.mxu0 0
    %1563 = vmatprep.subr.bf16.mxu0 0
    %1564 = vmatpush2.bf16.msra.mxu0 0
    %1565 = vmatprep.subr.bf16.mxu0 0
    %1566 = vmatpush2.bf16.msra.mxu0 0
    %1567 = vmatprep.mubr.bf16.mxu0 0
    %1568 = vmatmul.mubr.bf16.gmra.mxu0 %v1465
    %v1569 = vpop.f32.mrf.mxu0
    %v1570 = vadd.f32 %v1486, %v1569
    %v1571 = vpop.f32.mrf.mxu0
    %v1572 = vpop.f32.mrf.mxu0
    %v1573 = vpop.f32.mrf.mxu0
    %1574 = vdwg.mxu0
    %vm1575 = vcmask 1041408
    %v1576 = vsel %vm1575, %v1570, -inf
    %1577 = vmax.xlane.f32.xlu0 %v1576
    %v1578 = vpop.xlane.xlu0 %1577
    %v1579 = vsub.f32 %v1570, %v1578
    %v1580 = vmul.f32 %v1579, 1.442695
    %v1581 = vpow.pop %v1580
    %v1582 = vsel %vm1575, %v1581, 0.0
    %1583 = vadd.xlane.f32.xlu0 %v1582
    %v1584 = vpop.xlane.xlu0 %1583
    %v1585 = vrcp.pop %v1584
    %v1586 = vmul.f32 %v1581, %v1585
    %1587 = vst [vmem:[#allocation3] sm:$0x3] %v1586
    // Predicated region
    $region14: #{forward_pallas.1} parent=1 // pred_check
      _
    $region15: #{forward_pallas.1} parent=1 // pred_check_branch
      %1589 = sbr.rel (0) target = $region17
    $region16: #{forward_pallas.1} parent=1 // pred_region
      %s1591 = ssub.s32 32, 32
      %1592 = vsyncadd [#allocation4], %s1591
      %s1594 = sshll.u32 [#allocation3], 4
      %s1595 = int_to_ptr.vmem [resolvable:$true] %s1594
      %1597 = dma.vmem_to_hbm [thread:$0]  %s1595, 32, %s3, [#allocation4]
    $region17: #{forward_pallas.1} parent=1 // pred_fallthru
      _
    // Predicated region
    $region18: #{forward_pallas.1} parent=1 // pred_check
      _
    $region19: #{forward_pallas.1} parent=1 // pred_check_branch
      %1599 = sbr.rel (0) target = $region21
    $region20: #{forward_pallas.1} parent=1 // pred_region
      %1600 = dma.done [#allocation4], 32
    $region21: #{forward_pallas.1} parent=1 // pred_fallthru
      _
    %1601 = vsyncpa [#allocation4], 1

</llo_original>
